<compile_context>
chip_gen: v7x
topology: tpu7x:2x2x1
jax: 0.10.0
libtpu: 0.0.40
codegen_flags: <defaults>
</compile_context>

<pallas_src>
import functools

import jax
import jax.numpy as jnp
from jax import lax
from jax.experimental import pallas as pl
from jax.experimental.pallas import tpu as pltpu

EPS = 1e-5


# ---------------------------------------------------------------------------
# in-kernel helpers
# ---------------------------------------------------------------------------
def _fill_padded(pad_ref, interior, hp, wp):
    """Write `interior` (hp, wp, C) into the centre of the (hp+2, wp+2, C)
    scratch and zero ONLY the 1-pixel halo ring (halo-only zeroing).

    The ring is re-zeroed every grid step on purpose: a pl.when(pid == 0)
    guard would be wrong under "parallel" megacore sharding, where each
    TensorCore has its own private scratch and only one core executes step 0.
    """
    c = pad_ref.shape[-1]
    dt = pad_ref.dtype
    pad_ref[pl.ds(0, 1), :, :] = jnp.zeros((1, wp + 2, c), dt)              # top
    pad_ref[pl.ds(hp + 1, 1), :, :] = jnp.zeros((1, wp + 2, c), dt)         # bottom
    pad_ref[pl.ds(1, hp), pl.ds(0, 1), :] = jnp.zeros((hp, 1, c), dt)       # left
    pad_ref[pl.ds(1, hp), pl.ds(wp + 1, 1), :] = jnp.zeros((hp, 1, c), dt)  # right
    pad_ref[pl.ds(1, hp), pl.ds(1, wp), :] = interior.astype(dt)            # interior


def _conv3x3(pad_ref, w_ref, hp, wp):
    """3x3 'same' conv from a zero-ring padded scratch as ONE fat MXU matmul.

    pad_ref: (hp+2, wp+2, C_in), compute dtype, ring already zero.
    w_ref:   (9*C_in, C_out) — taps ordered (ky, kx, C_in) along K.
    Returns  (hp*wp, C_out) float32.

    The zero ring makes every tap a pure static slice (no masks).  The three
    dx-shifted planes are loaded once; each dy tap is then a major-axis slice.
    All 9 taps are concatenated along the contraction dim, so the MXU sees a
    single K = 9*C_in push instead of 3 (or 9) skinny ones.
    """
    c_in = pad_ref.shape[-1]
    planes = [pad_ref[pl.ds(0, hp + 2), pl.ds(dx, wp), :] for dx in range(3)]
    taps = [planes[dx][dy:dy + hp].reshape(hp * wp, c_in)
            for dy in range(3) for dx in range(3)]            # (ky, kx)-ordered
    patch = jnp.concatenate(taps, axis=-1)                    # (hp*wp, 9*C_in)
    return jnp.dot(patch, w_ref[...], preferred_element_type=jnp.float32)


def _stats(h):
    """Per-channel (sum, sum_of_squares) of an (R, C) f32 tile -> (2, C)."""
    s = jnp.sum(h, axis=0, keepdims=True)
    ss = jnp.sum(h * h, axis=0, keepdims=True)
    return jnp.concatenate([s, ss], axis=0)


# ---------------------------------------------------------------------------
# kernels (one image tile per grid step; grid axis is "parallel")
# ---------------------------------------------------------------------------
def _conv_stats_kernel(x_ref, w_ref, h_ref, stats_ref, pad_ref, *, hp, wp):
    """pass A: conv1 of the pooled input; emit h1 (compute dtype) + f32 stats."""
    _fill_padded(pad_ref, x_ref[0], hp, wp)
    h = _conv3x3(pad_ref, w_ref, hp, wp)                        # (hp*wp, C_mid) f32
    stats_ref[...] = _stats(h).reshape(stats_ref.shape)         # stats from f32 acc
    h_ref[...] = h.astype(h_ref.dtype).reshape(h_ref.shape)     # cast in epilogue


def _bn_relu_conv_stats_kernel(h_ref, scale_ref, shift_ref, w_ref,
                               out_ref, stats_ref, pad_ref, *, hp, wp):
    """pass B: bn1 (precomputed f32 scale/shift) + relu + conv2; emit h2 + stats."""
    a = jnp.maximum(h_ref[0].astype(jnp.float32) * scale_ref[...] + shift_ref[...],
                    0.0)                                        # (hp*wp, C_mid) f32
    _fill_padded(pad_ref, a.reshape(hp, wp, pad_ref.shape[-1]), hp, wp)
    h = _conv3x3(pad_ref, w_ref, hp, wp)                        # (hp*wp, C_out) f32
    stats_ref[...] = _stats(h).reshape(stats_ref.shape)
    out_ref[...] = h.astype(out_ref.dtype).reshape(out_ref.shape)


# ---------------------------------------------------------------------------
# wrapper
# ---------------------------------------------------------------------------
def _vmem_limit_bytes():
    """~3/4 of physical VMEM, capped at 100 MiB (v5e/v6e: 128 MiB, v7x: 64 MiB)."""
    try:
        cap = int(pltpu.get_tpu_info().vmem_capacity_bytes)
    except Exception:  # best-effort query; fall back to a safe value
        cap = 64 * 1024 * 1024
    return min(cap * 3 // 4, 100 * 1024 * 1024)


def _bn_scale_shift(stats_partials, count, gamma, beta):
    """Fold per-tile (sum, sumsq) partials into BN scale/shift (training-mode
    batch statistics, biased variance — what a fresh PyTorch BatchNorm2d does).
    NOTE: E[x^2]-E[x]^2 form in f32; fine at these scales — switch to a shifted
    / Welford accumulation if activations develop huge means in real training."""
    total = jnp.sum(stats_partials.astype(jnp.float32), axis=0)   # (2, C)
    mean = total[0] / count
    var = jnp.maximum(total[1] / count - mean * mean, 0.0)
    scale = gamma * lax.rsqrt(var + EPS)
    shift = beta - mean * scale
    return scale.reshape(1, -1), shift.reshape(1, -1)


def down_forward(x_nchw, params, *, compute_dtype=jnp.bfloat16):
    """Down(C_in, C_out): (N, C_in, H, W) -> (N, C_out, H/2, W/2)."""
    # Conv biases b1/b2 are NOT passed to the kernels: a per-channel constant
    # added before training-mode BatchNorm is exactly cancelled by the mean
    # subtraction.  (Reinstate them if eval-mode/running-stat BN is ever used.)
    w1, _b1, g1, be1, w2, _b2, g2, be2 = params
    N, C_in, H, W = x_nchw.shape
    assert H % 2 == 0 and W % 2 == 0, "MaxPool2d(2) path assumes even H, W"
    Hp, Wp = H // 2, W // 2
    R = N * Hp * Wp
    C_mid = w1.shape[-1]
    C_out = w2.shape[-1]

    # glue: 2x2 maxpool in the wrapper (4x less kernel input DMA), NHWC layout.
    x = jnp.transpose(x_nchw, (0, 2, 3, 1)).astype(jnp.float32)
    pooled = jnp.maximum(jnp.maximum(x[:, 0::2, 0::2, :], x[:, 0::2, 1::2, :]),
                         jnp.maximum(x[:, 1::2, 0::2, :], x[:, 1::2, 1::2, :]))
    pooled = pooled.astype(compute_dtype)                       # (N, Hp, Wp, C_in)

    # weights: (9, C_in, C_out) -> (9*C_in, C_out): all 9 taps contiguous along
    # K so each conv pass is a single fat MXU matmul.
    w1r = w1.reshape(9 * C_in, C_mid).astype(compute_dtype)
    w2r = w2.reshape(9 * C_mid, C_out).astype(compute_dtype)

    cp = pltpu.CompilerParams(
        dimension_semantics=("parallel",),        # image tiles are independent
        vmem_limit_bytes=_vmem_limit_bytes())

    # TODO(synk): for production-size feature maps add an H-tile grid axis with
    # a 1-row halo so per-step blocks stay under v7x's 64 MiB VMEM and its two
    # TensorCores stay load-balanced when N is small.
    # TODO(synk): for stages with C < 128, pack h1/h2 lane-dense (last dim Wp*C)
    # in the kernel epilogue to avoid masked partial stores (needs a
    # lane-merging relayout before the store).

    # ---- pass A: conv1 -> h1 (compute dtype), per-image (sum, sumsq) of h1
    h1, stats1 = pl.pallas_call(
        functools.partial(_conv_stats_kernel, hp=Hp, wp=Wp),
        grid=(N,),
        in_specs=[
            pl.BlockSpec((1, Hp, Wp, C_in), lambda n: (n, 0, 0, 0)),
            pl.BlockSpec((9 * C_in, C_mid), lambda n: (0, 0)),
        ],
        out_specs=(
            pl.BlockSpec((1, Hp * Wp, C_mid), lambda n: (n, 0, 0)),
            pl.BlockSpec((1, 2, C_mid), lambda n: (n, 0, 0)),
        ),
        out_shape=(
            jax.ShapeDtypeStruct((N, Hp * Wp, C_mid), compute_dtype),
            jax.ShapeDtypeStruct((N, 2, C_mid), jnp.float32),
        ),
        scratch_shapes=[pltpu.VMEM((Hp + 2, Wp + 2, C_in), compute_dtype)],
        compiler_params=cp,
    )(pooled, w1r)

    scale1, shift1 = _bn_scale_shift(stats1, R, g1, be1)        # (1, C_mid) f32

    # ---- pass B: bn1 + relu + conv2 -> h2 (compute dtype), per-image stats of h2
    h2, stats2 = pl.pallas_call(
        functools.partial(_bn_relu_conv_stats_kernel, hp=Hp, wp=Wp),
        grid=(N,),
        in_specs=[
            pl.BlockSpec((1, Hp * Wp, C_mid), lambda n: (n, 0, 0)),
            pl.BlockSpec((1, C_mid), lambda n: (0, 0)),
            pl.BlockSpec((1, C_mid), lambda n: (0, 0)),
            pl.BlockSpec((9 * C_mid, C_out), lambda n: (0, 0)),
        ],
        out_specs=(
            pl.BlockSpec((1, Hp * Wp, C_out), lambda n: (n, 0, 0)),
            pl.BlockSpec((1, 2, C_out), lambda n: (n, 0, 0)),
        ),
        out_shape=(
            jax.ShapeDtypeStruct((N, Hp * Wp, C_out), compute_dtype),
            jax.ShapeDtypeStruct((N, 2, C_out), jnp.float32),
        ),
        scratch_shapes=[pltpu.VMEM((Hp + 2, Wp + 2, C_mid), compute_dtype)],
        compiler_params=cp,
    )(h1, scale1, shift1, w2r)

    scale2, shift2 = _bn_scale_shift(stats2, R, g2, be2)

    # ---- epilogue (plain jnp, fused by XLA with the final NCHW transpose):
    # bn2 + relu applied to the compute-dtype h2; stats come from the f32 acc.
    y = h2.reshape(N, Hp, Wp, C_out).astype(jnp.float32)
    y = jnp.maximum(y * scale2.reshape(1, 1, 1, C_out)
                    + shift2.reshape(1, 1, 1, C_out), 0.0)
    return jnp.transpose(y, (0, 3, 1, 2))                       # back to NCHW


# ---------------------------------------------------------------------------
# params / reference / test
# ---------------------------------------------------------------------------
def init_params(key, C_in, C_out):
    """Deterministic synthetic parameters for DoubleConv(C_in, C_out)."""
    C_mid = C_out
    ks = jax.random.split(key, 8)
    w1 = 0.2 * jax.random.normal(ks[0], (9, C_in, C_mid), jnp.float32)  # (ky*3+kx, Cin, Cmid)
    b1 = 0.1 * jax.random.normal(ks[1], (C_mid,), jnp.float32)
    g1 = 1.0 + 0.1 * jax.random.normal(ks[2], (C_mid,), jnp.float32)
    be1 = 0.1 * jax.random.normal(ks[3], (C_mid,), jnp.float32)
    w2 = 0.2 * jax.random.normal(ks[4], (9, C_mid, C_out), jnp.float32)
    b2 = 0.1 * jax.random.normal(ks[5], (C_out,), jnp.float32)
    g2 = 1.0 + 0.1 * jax.random.normal(ks[6], (C_out,), jnp.float32)
    be2 = 0.1 * jax.random.normal(ks[7], (C_out,), jnp.float32)
    return (w1, b1, g1, be1, w2, b2, g2, be2)


def down_reference(x_nchw, params):
    """Pure-JAX reference (maxpool + conv(+bias) + train-mode BN + relu)."""
    w1, b1, g1, be1, w2, b2, g2, be2 = params

    xp = lax.reduce_window(x_nchw, -jnp.inf, lax.max,
                           (1, 1, 2, 2), (1, 1, 2, 2), 'VALID')

    def conv_bn_relu(x, w, b, g, be):
        C_in, C_out = w.shape[1], w.shape[2]
        w_oihw = jnp.transpose(w.reshape(3, 3, C_in, C_out), (3, 2, 0, 1))
        y = lax.conv_general_dilated(x, w_oihw, (1, 1), ((1, 1), (1, 1)),
                                     dimension_numbers=('NCHW', 'OIHW', 'NCHW'))
        y = y + b[None, :, None, None]
        mean = jnp.mean(y, axis=(0, 2, 3), keepdims=True)
        var = jnp.mean((y - mean) ** 2, axis=(0, 2, 3), keepdims=True)
        y = (y - mean) * lax.rsqrt(var + EPS)
        y = y * g[None, :, None, None] + be[None, :, None, None]
        return jnp.maximum(y, 0.0)

    h = conv_bn_relu(xp, w1, b1, g1, be1)
    return conv_bn_relu(h, w2, b2, g2, be2)


if __name__ == "__main__":
    key = jax.random.PRNGKey(0)
    kx, kp = jax.random.split(key)

    N, C_in, C_out, H, W = 2, 4, 8, 16, 16
    x = jax.random.normal(kx, (N, C_in, H, W), jnp.float32)
    params = init_params(kp, C_in, C_out)

    ref = down_reference(x, params)

    # optimized path: bf16 MXU operands AND bf16 intermediates, f32 accumulation.
    # (BN scale/shift come from the f32 accumulator but are applied to the
    # bf16-rounded h1/h2 — well below the bf16 tolerance used here.)
    out = jax.block_until_ready(jax.jit(down_forward)(x, params))
    assert out.shape == (N, C_out, H // 2, W // 2), out.shape
    rel = jnp.linalg.norm(out - ref) / jnp.linalg.norm(ref)
    if not (jnp.allclose(out, ref, atol=1e-1, rtol=1e-1) and rel < 4e-2):
        raise AssertionError(f"bf16 Pallas kernel mismatch (rel={rel:.3e})")

    # f32 path for a tight numerical check of the kernel structure
    out32 = jax.block_until_ready(
        jax.jit(functools.partial(down_forward, compute_dtype=jnp.float32))(x, params))
    if not jnp.allclose(out32, ref, atol=2e-3, rtol=2e-3):
        err = float(jnp.max(jnp.abs(out32 - ref)))
        raise AssertionError(f"f32 Pallas kernel does not match reference (max abs err={err:.3e})")

    print("KERNEL_OK")
</pallas_src>

<mosaic_0001>
module attributes {stable_mosaic.version = 11 : i64} {
  func.func @_conv_stats_kernel(%arg0: i32, %arg1: memref<1x8x8x4xbf16, #tpu.memory_space<vmem>>, %arg2: memref<36x8xbf16, #tpu.memory_space<vmem>>, %arg3: memref<1x64x8xbf16, #tpu.memory_space<vmem>>, %arg4: memref<1x2x8xf32, #tpu.memory_space<vmem>>, %arg5: memref<10x10x4xbf16, #tpu.memory_space<vmem>>) attributes {dimension_semantics = [#tpu.dimension_semantics<parallel>], iteration_bounds = array<i64: 2>, scalar_prefetch = 0 : i64, scratch_operands = 1 : i64, tpu.core_type = #tpu.core_type<tc>, window_params = [{transform_indices = @transform_0, window_bounds = array<i64: 1, 8, 8, 4>}, {pipeline_mode = #tpu.pipeline_mode<synchronous>, transform_indices = @transform_1, window_bounds = array<i64: 36, 8>}, {transform_indices = @transform_2, window_bounds = array<i64: 1, 64, 8>}, {transform_indices = @transform_3, window_bounds = array<i64: 1, 2, 8>}]} {
    %c0 = arith.constant 0 : index
    %c0_0 = arith.constant 0 : index
    %c0_1 = arith.constant 0 : index
    %c0_2 = arith.constant 0 : index
    %0 = vector.load %arg1[%c0, %c0_0, %c0_1, %c0_2] : memref<1x8x8x4xbf16, #tpu.memory_space<vmem>>, vector<1x8x8x4xbf16>
    %1 = vector.shape_cast %0 : vector<1x8x8x4xbf16> to vector<8x8x4xbf16>
    %cst = arith.constant 0.000000e+00 : bf16
    %2 = vector.broadcast %cst : bf16 to vector<1x10x4xbf16>
    %c0_3 = arith.constant 0 : index
    %c0_4 = arith.constant 0 : index
    %c0_5 = arith.constant 0 : index
    %3 = vector.load %arg5[%c0_3, %c0_4, %c0_5] : memref<10x10x4xbf16, #tpu.memory_space<vmem>>, vector<1x10x4xbf16>
    tpu.vector_store %arg5[%c0_3, %c0_4, %c0_5], %2 {strides = array<i32>} : memref<10x10x4xbf16, #tpu.memory_space<vmem>>, vector<1x10x4xbf16>,
    %cst_6 = arith.constant 0.000000e+00 : bf16
    %4 = vector.broadcast %cst_6 : bf16 to vector<1x10x4xbf16>
    %c9 = arith.constant 9 : index
    %c0_7 = arith.constant 0 : index
    %c0_8 = arith.constant 0 : index
    %5 = vector.load %arg5[%c9, %c0_7, %c0_8] : memref<10x10x4xbf16, #tpu.memory_space<vmem>>, vector<1x10x4xbf16>
    tpu.vector_store %arg5[%c9, %c0_7, %c0_8], %4 {strides = array<i32>} : memref<10x10x4xbf16, #tpu.memory_space<vmem>>, vector<1x10x4xbf16>,
    %cst_9 = arith.constant 0.000000e+00 : bf16
    %6 = vector.broadcast %cst_9 : bf16 to vector<8x1x4xbf16>
    %c1 = arith.constant 1 : index
    %c0_10 = arith.constant 0 : index
    %c0_11 = arith.constant 0 : index
    %7 = vector.load %arg5[%c1, %c0_10, %c0_11] : memref<10x10x4xbf16, #tpu.memory_space<vmem>>, vector<8x1x4xbf16>
    tpu.vector_store %arg5[%c1, %c0_10, %c0_11], %6 {strides = array<i32>} : memref<10x10x4xbf16, #tpu.memory_space<vmem>>, vector<8x1x4xbf16>,
    %cst_12 = arith.constant 0.000000e+00 : bf16
    %8 = vector.broadcast %cst_12 : bf16 to vector<8x1x4xbf16>
    %c1_13 = arith.constant 1 : index
    %c9_14 = arith.constant 9 : index
    %c0_15 = arith.constant 0 : index
    %9 = vector.load %arg5[%c1_13, %c9_14, %c0_15] : memref<10x10x4xbf16, #tpu.memory_space<vmem>>, vector<8x1x4xbf16>
    tpu.vector_store %arg5[%c1_13, %c9_14, %c0_15], %8 {strides = array<i32>} : memref<10x10x4xbf16, #tpu.memory_space<vmem>>, vector<8x1x4xbf16>,
    %c1_16 = arith.constant 1 : index
    %c1_17 = arith.constant 1 : index
    %c0_18 = arith.constant 0 : index
    %10 = vector.load %arg5[%c1_16, %c1_17, %c0_18] : memref<10x10x4xbf16, #tpu.memory_space<vmem>>, vector<8x8x4xbf16>
    tpu.vector_store %arg5[%c1_16, %c1_17, %c0_18], %1 {strides = array<i32>} : memref<10x10x4xbf16, #tpu.memory_space<vmem>>, vector<8x8x4xbf16>,
    %c0_19 = arith.constant 0 : index
    %c0_20 = arith.constant 0 : index
    %c0_21 = arith.constant 0 : index
    %11 = vector.load %arg5[%c0_19, %c0_20, %c0_21] : memref<10x10x4xbf16, #tpu.memory_space<vmem>>, vector<10x8x4xbf16>
    %c0_22 = arith.constant 0 : index
    %c1_23 = arith.constant 1 : index
    %c0_24 = arith.constant 0 : index
    %12 = vector.load %arg5[%c0_22, %c1_23, %c0_24] : memref<10x10x4xbf16, #tpu.memory_space<vmem>>, vector<10x8x4xbf16>
    %c0_25 = arith.constant 0 : index
    %c2 = arith.constant 2 : index
    %c0_26 = arith.constant 0 : index
    %13 = vector.load %arg5[%c0_25, %c2, %c0_26] : memref<10x10x4xbf16, #tpu.memory_space<vmem>>, vector<10x8x4xbf16>
    %14 = vector.extract_strided_slice %11 {offsets = [0, 0, 0], sizes = [8, 8, 4], strides = [1, 1, 1]} : vector<10x8x4xbf16> to vector<8x8x4xbf16>
    %15 = vector.shape_cast %14 : vector<8x8x4xbf16> to vector<64x4xbf16>
    %16 = vector.extract_strided_slice %12 {offsets = [0, 0, 0], sizes = [8, 8, 4], strides = [1, 1, 1]} : vector<10x8x4xbf16> to vector<8x8x4xbf16>
    %17 = vector.shape_cast %16 : vector<8x8x4xbf16> to vector<64x4xbf16>
    %18 = vector.extract_strided_slice %13 {offsets = [0, 0, 0], sizes = [8, 8, 4], strides = [1, 1, 1]} : vector<10x8x4xbf16> to vector<8x8x4xbf16>
    %19 = vector.shape_cast %18 : vector<8x8x4xbf16> to vector<64x4xbf16>
    %20 = vector.extract_strided_slice %11 {offsets = [1, 0, 0], sizes = [8, 8, 4], strides = [1, 1, 1]} : vector<10x8x4xbf16> to vector<8x8x4xbf16>
    %21 = vector.shape_cast %20 : vector<8x8x4xbf16> to vector<64x4xbf16>
    %22 = vector.extract_strided_slice %12 {offsets = [1, 0, 0], sizes = [8, 8, 4], strides = [1, 1, 1]} : vector<10x8x4xbf16> to vector<8x8x4xbf16>
    %23 = vector.shape_cast %22 : vector<8x8x4xbf16> to vector<64x4xbf16>
    %24 = vector.extract_strided_slice %13 {offsets = [1, 0, 0], sizes = [8, 8, 4], strides = [1, 1, 1]} : vector<10x8x4xbf16> to vector<8x8x4xbf16>
    %25 = vector.shape_cast %24 : vector<8x8x4xbf16> to vector<64x4xbf16>
    %26 = vector.extract_strided_slice %11 {offsets = [2, 0, 0], sizes = [8, 8, 4], strides = [1, 1, 1]} : vector<10x8x4xbf16> to vector<8x8x4xbf16>
    %27 = vector.shape_cast %26 : vector<8x8x4xbf16> to vector<64x4xbf16>
    %28 = vector.extract_strided_slice %12 {offsets = [2, 0, 0], sizes = [8, 8, 4], strides = [1, 1, 1]} : vector<10x8x4xbf16> to vector<8x8x4xbf16>
    %29 = vector.shape_cast %28 : vector<8x8x4xbf16> to vector<64x4xbf16>
    %30 = vector.extract_strided_slice %13 {offsets = [2, 0, 0], sizes = [8, 8, 4], strides = [1, 1, 1]} : vector<10x8x4xbf16> to vector<8x8x4xbf16>
    %31 = vector.shape_cast %30 : vector<8x8x4xbf16> to vector<64x4xbf16>
    %32 = tpu.concatenate %15, %17, %19, %21, %23, %25, %27, %29, %31 in 1 : vector<64x4xbf16>, vector<64x4xbf16>, vector<64x4xbf16>, vector<64x4xbf16>, vector<64x4xbf16>, vector<64x4xbf16>, vector<64x4xbf16>, vector<64x4xbf16>, vector<64x4xbf16> -> vector<64x36xbf16>
    %c0_27 = arith.constant 0 : index
    %c0_28 = arith.constant 0 : index
    %33 = vector.load %arg2[%c0_27, %c0_28] : memref<36x8xbf16, #tpu.memory_space<vmem>>, vector<36x8xbf16>
    %cst_29 = arith.constant dense<0.000000e+00> : vector<64x8xf32>
    %34 = tpu.matmul %32, %33, %cst_29 {dimension_numbers = #tpu.dot_dimension_numbers<[1], [0], [0], [1], [0, 0, 1, 1], [], []>} : vector<64x36xbf16>, vector<36x8xbf16>, vector<64x8xf32> -> vector<64x8xf32>
    %cst_30 = arith.constant dense<0.000000e+00> : vector<8xf32>
    %35 = vector.multi_reduction <add>, %34, %cst_30 [0] : vector<64x8xf32> to vector<8xf32>
    %36 = vector.shape_cast %35 : vector<8xf32> to vector<1x8xf32>
    %37 = arith.mulf %34, %34 : vector<64x8xf32>
    %cst_31 = arith.constant dense<0.000000e+00> : vector<8xf32>
    %38 = vector.multi_reduction <add>, %37, %cst_31 [0] : vector<64x8xf32> to vector<8xf32>
    %39 = vector.shape_cast %38 : vector<8xf32> to vector<1x8xf32>
    %40 = tpu.concatenate %36, %39 in 0 : vector<1x8xf32>, vector<1x8xf32> -> vector<2x8xf32>
    %41 = vector.shape_cast %40 : vector<2x8xf32> to vector<1x2x8xf32>
    %c0_32 = arith.constant 0 : index
    %c0_33 = arith.constant 0 : index
    %c0_34 = arith.constant 0 : index
    %42 = vector.load %arg4[%c0_32, %c0_33, %c0_34] : memref<1x2x8xf32, #tpu.memory_space<vmem>>, vector<1x2x8xf32>
    tpu.vector_store %arg4[%c0_32, %c0_33, %c0_34], %41 {strides = array<i32>} : memref<1x2x8xf32, #tpu.memory_space<vmem>>, vector<1x2x8xf32>,
    %43 = arith.truncf %34 : vector<64x8xf32> to vector<64x8xbf16>
    %44 = vector.shape_cast %43 : vector<64x8xbf16> to vector<1x64x8xbf16>
    %c0_35 = arith.constant 0 : index
    %c0_36 = arith.constant 0 : index
    %c0_37 = arith.constant 0 : index
    %45 = vector.load %arg3[%c0_35, %c0_36, %c0_37] : memref<1x64x8xbf16, #tpu.memory_space<vmem>>, vector<1x64x8xbf16>
    tpu.vector_store %arg3[%c0_35, %c0_36, %c0_37], %44 {strides = array<i32>} : memref<1x64x8xbf16, #tpu.memory_space<vmem>>, vector<1x64x8xbf16>,
    return
  }
  func.func @transform_0(%arg0: i32) -> (i32, i32, i32, i32) {
    %c0_i32 = arith.constant 0 : i32
    %c0_i32_0 = arith.constant 0 : i32
    %c0_i32_1 = arith.constant 0 : i32
    %c0_i32_2 = arith.constant 0 : i32
    return %arg0, %c0_i32, %c0_i32_0, %c0_i32_1 : i32, i32, i32, i32
  }
  func.func @transform_1(%arg0: i32) -> (i32, i32) {
    %c0_i32 = arith.constant 0 : i32
    %c0_i32_0 = arith.constant 0 : i32
    %c0_i32_1 = arith.constant 0 : i32
    return %c0_i32, %c0_i32_0 : i32, i32
  }
  func.func @transform_2(%arg0: i32) -> (i32, i32, i32) {
    %c0_i32 = arith.constant 0 : i32
    %c0_i32_0 = arith.constant 0 : i32
    %c0_i32_1 = arith.constant 0 : i32
    return %arg0, %c0_i32, %c0_i32_0 : i32, i32, i32
  }
  func.func @transform_3(%arg0: i32) -> (i32, i32, i32) {
    %c0_i32 = arith.constant 0 : i32
    %c0_i32_0 = arith.constant 0 : i32
    %c0_i32_1 = arith.constant 0 : i32
    return %arg0, %c0_i32, %c0_i32_0 : i32, i32, i32
  }
}

module attributes {stable_mosaic.version = 11 : i64} {
  func.func @_bn_relu_conv_stats_kernel(%arg0: i32, %arg1: memref<1x64x8xbf16, #tpu.memory_space<vmem>>, %arg2: memref<1x8xf32, #tpu.memory_space<vmem>>, %arg3: memref<1x8xf32, #tpu.memory_space<vmem>>, %arg4: memref<72x8xbf16, #tpu.memory_space<vmem>>, %arg5: memref<1x64x8xbf16, #tpu.memory_space<vmem>>, %arg6: memref<1x2x8xf32, #tpu.memory_space<vmem>>, %arg7: memref<10x10x8xbf16, #tpu.memory_space<vmem>>) attributes {dimension_semantics = [#tpu.dimension_semantics<parallel>], iteration_bounds = array<i64: 2>, scalar_prefetch = 0 : i64, scratch_operands = 1 : i64, tpu.core_type = #tpu.core_type<tc>, window_params = [{transform_indices = @transform_0, window_bounds = array<i64: 1, 64, 8>}, {pipeline_mode = #tpu.pipeline_mode<synchronous>, transform_indices = @transform_1, window_bounds = array<i64: 1, 8>}, {pipeline_mode = #tpu.pipeline_mode<synchronous>, transform_indices = @transform_2, window_bounds = array<i64: 1, 8>}, {pipeline_mode = #tpu.pipeline_mode<synchronous>, transform_indices = @transform_3, window_bounds = array<i64: 72, 8>}, {transform_indices = @transform_4, window_bounds = array<i64: 1, 64, 8>}, {transform_indices = @transform_5, window_bounds = array<i64: 1, 2, 8>}]} {
    %c0 = arith.constant 0 : index
    %c0_0 = arith.constant 0 : index
    %c0_1 = arith.constant 0 : index
    %0 = vector.load %arg1[%c0, %c0_0, %c0_1] : memref<1x64x8xbf16, #tpu.memory_space<vmem>>, vector<1x64x8xbf16>
    %1 = vector.shape_cast %0 : vector<1x64x8xbf16> to vector<64x8xbf16>
    %2 = arith.extf %1 : vector<64x8xbf16> to vector<64x8xf32>
    %c0_2 = arith.constant 0 : index
    %c0_3 = arith.constant 0 : index
    %3 = vector.load %arg2[%c0_2, %c0_3] : memref<1x8xf32, #tpu.memory_space<vmem>>, vector<1x8xf32>
    %4 = vector.broadcast %3 : vector<1x8xf32> to vector<64x8xf32>
    %5 = arith.mulf %2, %4 : vector<64x8xf32>
    %c0_4 = arith.constant 0 : index
    %c0_5 = arith.constant 0 : index
    %6 = vector.load %arg3[%c0_4, %c0_5] : memref<1x8xf32, #tpu.memory_space<vmem>>, vector<1x8xf32>
    %7 = vector.broadcast %6 : vector<1x8xf32> to vector<64x8xf32>
    %8 = arith.addf %5, %7 : vector<64x8xf32>
    %cst = arith.constant 0.000000e+00 : f32
    %9 = vector.broadcast %cst : f32 to vector<64x8xf32>
    %10 = arith.maximumf %8, %9 : vector<64x8xf32>
    %11 = vector.shape_cast %10 : vector<64x8xf32> to vector<8x8x8xf32>
    %cst_6 = arith.constant 0.000000e+00 : bf16
    %12 = vector.broadcast %cst_6 : bf16 to vector<1x10x8xbf16>
    %c0_7 = arith.constant 0 : index
    %c0_8 = arith.constant 0 : index
    %c0_9 = arith.constant 0 : index
    %13 = vector.load %arg7[%c0_7, %c0_8, %c0_9] : memref<10x10x8xbf16, #tpu.memory_space<vmem>>, vector<1x10x8xbf16>
    tpu.vector_store %arg7[%c0_7, %c0_8, %c0_9], %12 {strides = array<i32>} : memref<10x10x8xbf16, #tpu.memory_space<vmem>>, vector<1x10x8xbf16>,
    %cst_10 = arith.constant 0.000000e+00 : bf16
    %14 = vector.broadcast %cst_10 : bf16 to vector<1x10x8xbf16>
    %c9 = arith.constant 9 : index
    %c0_11 = arith.constant 0 : index
    %c0_12 = arith.constant 0 : index
    %15 = vector.load %arg7[%c9, %c0_11, %c0_12] : memref<10x10x8xbf16, #tpu.memory_space<vmem>>, vector<1x10x8xbf16>
    tpu.vector_store %arg7[%c9, %c0_11, %c0_12], %14 {strides = array<i32>} : memref<10x10x8xbf16, #tpu.memory_space<vmem>>, vector<1x10x8xbf16>,
    %cst_13 = arith.constant 0.000000e+00 : bf16
    %16 = vector.broadcast %cst_13 : bf16 to vector<8x1x8xbf16>
    %c1 = arith.constant 1 : index
    %c0_14 = arith.constant 0 : index
    %c0_15 = arith.constant 0 : index
    %17 = vector.load %arg7[%c1, %c0_14, %c0_15] : memref<10x10x8xbf16, #tpu.memory_space<vmem>>, vector<8x1x8xbf16>
    tpu.vector_store %arg7[%c1, %c0_14, %c0_15], %16 {strides = array<i32>} : memref<10x10x8xbf16, #tpu.memory_space<vmem>>, vector<8x1x8xbf16>,
    %cst_16 = arith.constant 0.000000e+00 : bf16
    %18 = vector.broadcast %cst_16 : bf16 to vector<8x1x8xbf16>
    %c1_17 = arith.constant 1 : index
    %c9_18 = arith.constant 9 : index
    %c0_19 = arith.constant 0 : index
    %19 = vector.load %arg7[%c1_17, %c9_18, %c0_19] : memref<10x10x8xbf16, #tpu.memory_space<vmem>>, vector<8x1x8xbf16>
    tpu.vector_store %arg7[%c1_17, %c9_18, %c0_19], %18 {strides = array<i32>} : memref<10x10x8xbf16, #tpu.memory_space<vmem>>, vector<8x1x8xbf16>,
    %20 = arith.truncf %11 : vector<8x8x8xf32> to vector<8x8x8xbf16>
    %c1_20 = arith.constant 1 : index
    %c1_21 = arith.constant 1 : index
    %c0_22 = arith.constant 0 : index
    %21 = vector.load %arg7[%c1_20, %c1_21, %c0_22] : memref<10x10x8xbf16, #tpu.memory_space<vmem>>, vector<8x8x8xbf16>
    tpu.vector_store %arg7[%c1_20, %c1_21, %c0_22], %20 {strides = array<i32>} : memref<10x10x8xbf16, #tpu.memory_space<vmem>>, vector<8x8x8xbf16>,
    %c0_23 = arith.constant 0 : index
    %c0_24 = arith.constant 0 : index
    %c0_25 = arith.constant 0 : index
    %22 = vector.load %arg7[%c0_23, %c0_24, %c0_25] : memref<10x10x8xbf16, #tpu.memory_space<vmem>>, vector<10x8x8xbf16>
    %c0_26 = arith.constant 0 : index
    %c1_27 = arith.constant 1 : index
    %c0_28 = arith.constant 0 : index
    %23 = vector.load %arg7[%c0_26, %c1_27, %c0_28] : memref<10x10x8xbf16, #tpu.memory_space<vmem>>, vector<10x8x8xbf16>
    %c0_29 = arith.constant 0 : index
    %c2 = arith.constant 2 : index
    %c0_30 = arith.constant 0 : index
    %24 = vector.load %arg7[%c0_29, %c2, %c0_30] : memref<10x10x8xbf16, #tpu.memory_space<vmem>>, vector<10x8x8xbf16>
    %25 = vector.extract_strided_slice %22 {offsets = [0, 0, 0], sizes = [8, 8, 8], strides = [1, 1, 1]} : vector<10x8x8xbf16> to vector<8x8x8xbf16>
    %26 = vector.shape_cast %25 : vector<8x8x8xbf16> to vector<64x8xbf16>
    %27 = vector.extract_strided_slice %23 {offsets = [0, 0, 0], sizes = [8, 8, 8], strides = [1, 1, 1]} : vector<10x8x8xbf16> to vector<8x8x8xbf16>
    %28 = vector.shape_cast %27 : vector<8x8x8xbf16> to vector<64x8xbf16>
    %29 = vector.extract_strided_slice %24 {offsets = [0, 0, 0], sizes = [8, 8, 8], strides = [1, 1, 1]} : vector<10x8x8xbf16> to vector<8x8x8xbf16>
    %30 = vector.shape_cast %29 : vector<8x8x8xbf16> to vector<64x8xbf16>
    %31 = vector.extract_strided_slice %22 {offsets = [1, 0, 0], sizes = [8, 8, 8], strides = [1, 1, 1]} : vector<10x8x8xbf16> to vector<8x8x8xbf16>
    %32 = vector.shape_cast %31 : vector<8x8x8xbf16> to vector<64x8xbf16>
    %33 = vector.extract_strided_slice %23 {offsets = [1, 0, 0], sizes = [8, 8, 8], strides = [1, 1, 1]} : vector<10x8x8xbf16> to vector<8x8x8xbf16>
    %34 = vector.shape_cast %33 : vector<8x8x8xbf16> to vector<64x8xbf16>
    %35 = vector.extract_strided_slice %24 {offsets = [1, 0, 0], sizes = [8, 8, 8], strides = [1, 1, 1]} : vector<10x8x8xbf16> to vector<8x8x8xbf16>
    %36 = vector.shape_cast %35 : vector<8x8x8xbf16> to vector<64x8xbf16>
    %37 = vector.extract_strided_slice %22 {offsets = [2, 0, 0], sizes = [8, 8, 8], strides = [1, 1, 1]} : vector<10x8x8xbf16> to vector<8x8x8xbf16>
    %38 = vector.shape_cast %37 : vector<8x8x8xbf16> to vector<64x8xbf16>
    %39 = vector.extract_strided_slice %23 {offsets = [2, 0, 0], sizes = [8, 8, 8], strides = [1, 1, 1]} : vector<10x8x8xbf16> to vector<8x8x8xbf16>
    %40 = vector.shape_cast %39 : vector<8x8x8xbf16> to vector<64x8xbf16>
    %41 = vector.extract_strided_slice %24 {offsets = [2, 0, 0], sizes = [8, 8, 8], strides = [1, 1, 1]} : vector<10x8x8xbf16> to vector<8x8x8xbf16>
    %42 = vector.shape_cast %41 : vector<8x8x8xbf16> to vector<64x8xbf16>
    %43 = tpu.concatenate %26, %28, %30, %32, %34, %36, %38, %40, %42 in 1 : vector<64x8xbf16>, vector<64x8xbf16>, vector<64x8xbf16>, vector<64x8xbf16>, vector<64x8xbf16>, vector<64x8xbf16>, vector<64x8xbf16>, vector<64x8xbf16>, vector<64x8xbf16> -> vector<64x72xbf16>
    %c0_31 = arith.constant 0 : index
    %c0_32 = arith.constant 0 : index
    %44 = vector.load %arg4[%c0_31, %c0_32] : memref<72x8xbf16, #tpu.memory_space<vmem>>, vector<72x8xbf16>
    %cst_33 = arith.constant dense<0.000000e+00> : vector<64x8xf32>
    %45 = tpu.matmul %43, %44, %cst_33 {dimension_numbers = #tpu.dot_dimension_numbers<[1], [0], [0], [1], [0, 0, 1, 1], [], []>} : vector<64x72xbf16>, vector<72x8xbf16>, vector<64x8xf32> -> vector<64x8xf32>
    %cst_34 = arith.constant dense<0.000000e+00> : vector<8xf32>
    %46 = vector.multi_reduction <add>, %45, %cst_34 [0] : vector<64x8xf32> to vector<8xf32>
    %47 = vector.shape_cast %46 : vector<8xf32> to vector<1x8xf32>
    %48 = arith.mulf %45, %45 : vector<64x8xf32>
    %cst_35 = arith.constant dense<0.000000e+00> : vector<8xf32>
    %49 = vector.multi_reduction <add>, %48, %cst_35 [0] : vector<64x8xf32> to vector<8xf32>
    %50 = vector.shape_cast %49 : vector<8xf32> to vector<1x8xf32>
    %51 = tpu.concatenate %47, %50 in 0 : vector<1x8xf32>, vector<1x8xf32> -> vector<2x8xf32>
    %52 = vector.shape_cast %51 : vector<2x8xf32> to vector<1x2x8xf32>
    %c0_36 = arith.constant 0 : index
    %c0_37 = arith.constant 0 : index
    %c0_38 = arith.constant 0 : index
    %53 = vector.load %arg6[%c0_36, %c0_37, %c0_38] : memref<1x2x8xf32, #tpu.memory_space<vmem>>, vector<1x2x8xf32>
    tpu.vector_store %arg6[%c0_36, %c0_37, %c0_38], %52 {strides = array<i32>} : memref<1x2x8xf32, #tpu.memory_space<vmem>>, vector<1x2x8xf32>,
    %54 = arith.truncf %45 : vector<64x8xf32> to vector<64x8xbf16>
    %55 = vector.shape_cast %54 : vector<64x8xbf16> to vector<1x64x8xbf16>
    %c0_39 = arith.constant 0 : index
    %c0_40 = arith.constant 0 : index
    %c0_41 = arith.constant 0 : index
    %56 = vector.load %arg5[%c0_39, %c0_40, %c0_41] : memref<1x64x8xbf16, #tpu.memory_space<vmem>>, vector<1x64x8xbf16>
    tpu.vector_store %arg5[%c0_39, %c0_40, %c0_41], %55 {strides = array<i32>} : memref<1x64x8xbf16, #tpu.memory_space<vmem>>, vector<1x64x8xbf16>,
    return
  }
  func.func @transform_0(%arg0: i32) -> (i32, i32, i32) {
    %c0_i32 = arith.constant 0 : i32
    %c0_i32_0 = arith.constant 0 : i32
    %c0_i32_1 = arith.constant 0 : i32
    return %arg0, %c0_i32, %c0_i32_0 : i32, i32, i32
  }
  func.func @transform_1(%arg0: i32) -> (i32, i32) {
    %c0_i32 = arith.constant 0 : i32
    %c0_i32_0 = arith.constant 0 : i32
    %c0_i32_1 = arith.constant 0 : i32
    return %c0_i32, %c0_i32_0 : i32, i32
  }
  func.func @transform_2(%arg0: i32) -> (i32, i32) {
    %c0_i32 = arith.constant 0 : i32
    %c0_i32_0 = arith.constant 0 : i32
    %c0_i32_1 = arith.constant 0 : i32
    return %c0_i32, %c0_i32_0 : i32, i32
  }
  func.func @transform_3(%arg0: i32) -> (i32, i32) {
    %c0_i32 = arith.constant 0 : i32
    %c0_i32_0 = arith.constant 0 : i32
    %c0_i32_1 = arith.constant 0 : i32
    return %c0_i32, %c0_i32_0 : i32, i32
  }
  func.func @transform_4(%arg0: i32) -> (i32, i32, i32) {
    %c0_i32 = arith.constant 0 : i32
    %c0_i32_0 = arith.constant 0 : i32
    %c0_i32_1 = arith.constant 0 : i32
    return %arg0, %c0_i32, %c0_i32_0 : i32, i32, i32
  }
  func.func @transform_5(%arg0: i32) -> (i32, i32, i32) {
    %c0_i32 = arith.constant 0 : i32
    %c0_i32_0 = arith.constant 0 : i32
    %c0_i32_1 = arith.constant 0 : i32
    return %arg0, %c0_i32, %c0_i32_0 : i32, i32, i32
  }
}

</mosaic_0001>

<llo_original>
// kernel: down_forward.3
$region0: #{down_forward.3}
  #allocation0 [shape = 'u32[]', space=smem, size = 0x4, offset = 0x4, fixed_abs, tag = 'smem constant byte address 0x4 - core index']
  #allocation1 [shape = 'u32[144,128]{1,0:T(1,128)}', space=vmem, size = 0x12000, scoped, tag = 'internal scratch']
  #allocation2 [shape = 'bf16[10,10,8]{2,1,0:T(8,128)(2,1)}', space=vmem, size = 0xa000, scoped, tag = 'scratch operand']
  %s0 = inlined_call_operand.vmem [shape: bf16[2,64,8], index: 0, kind: input, shape index: {}]
  %s1 = inlined_call_operand.vmem [shape: f32[1,8], index: 1, kind: input, shape index: {}]
  %s2 = inlined_call_operand.vmem [shape: f32[1,8], index: 2, kind: input, shape index: {}]
  %s3 = inlined_call_operand.vmem [shape: bf16[72,8], index: 3, kind: input, shape index: {}]
  %s4 = inlined_call_operand.vmem [shape: bf16[2,64,8], index: 4, kind: output, shape index: {0}]
  %s5 = inlined_call_operand.vmem [shape: f32[2,2,8], index: 5, kind: output, shape index: {1}]
  %6 = xla_tuple %s4, %s5
  %s7 = sld [smem:[#allocation0]]
  $region57: #{down_forward.3} parent=0
    _
  %s9 = ssub.s32 1, %s7
  %s10 = scalar_select 0, %s9, %s7
  loop: start=0, step=1, limit=4
  $region2: #{down_forward.3} parent=0 // loop_pre_header
    _
  $region3: #{down_forward.3} parent=0 // loop_header
    %s12 = sphi 0, %s16
    %p13 = scmp.ge.s32.totalorder %s12, 4
    %s22 = sphi 0, %s24
    %s25 = sphi 0, %s22
    %s26 = sphi 0, %s25
    %s42 = sphi 0, %s26
    %s46 = sphi 0, %s46
    %s48 = sphi 0, %s46
    %s49 = sphi 0, %s48
    %s63 = sphi 0, %s49
    %s67 = sphi 0, %s67
    %s69 = sphi 0, %s67
    %s70 = sphi 0, %s69
    %s84 = sphi 0, %s70
    %s88 = sphi 0, %s88
    %s90 = sphi 0, %s88
    %s91 = sphi 0, %s90
    %s105 = sphi 0, %s91
    %s111 = sphi 0, %s113
    %s114 = sphi 0, %s111
    %s115 = sphi 0, %s114
    %s131 = sphi 0, %s115
    %s137 = sphi 0, %s139
    %s140 = sphi 0, %s137
    %s141 = sphi 0, %s140
    %s157 = sphi 0, %s141
  $region4: #{down_forward.3} parent=0 // loop_header_branch
    %15 = sbr.rel (%p13) target = $region8
  $region5: #{down_forward.3} parent=0 // loop_body
    %s17 = ssub.s32 %s12, 1
    %s18 = ssub.s32 %s12, 2
    %s19 = sadd.s32 %s12, 1
    %s20 = ssub.s32 %s12, %s19
    %p21 = scmp.eq.s32.totalorder %s20, 0
    %s23 = sadd.s32 %s22, 1
    %s24 = scalar_select %p21, %s22, %s23
    %p27 = pneg %p21
    %p28 = scmp.eq.s32.totalorder %s12, 1
    %p29 = por %p27, %p28
    %p30 = scmp.ne.s32.totalorder %s22, %s25
    %p31 = scmp.eq.s32.totalorder %s12, 0
    %p32 = por %p30, %p31
    %p33 = scmp.ne.s32.totalorder %s22, %s25
    %p34 = scmp.eq.s32.totalorder %s17, 1
    %p35 = por %p33, %p34
    %p36 = scmp.ne.s32.totalorder %s25, %s26
    %p37 = scmp.eq.s32.totalorder %s17, 0
    %p38 = por %p36, %p37
    %p39 = scmp.ne.s32.totalorder %s25, %s26
    %p40 = scmp.eq.s32.totalorder %s18, 1
    %p41 = por %p39, %p40
    %p43 = scmp.ne.s32.totalorder %s26, %s42
    %p44 = scmp.eq.s32.totalorder %s18, 0
    %p45 = por %p43, %p44
    %s47 = sadd.s32 %s46, 1
    %p50 = scmp.eq.s32.totalorder %s12, 1
    %p51 = scmp.ne.s32.totalorder %s46, %s48
    %p52 = scmp.eq.s32.totalorder %s12, 0
    %p53 = por %p51, %p52
    %p54 = scmp.ne.s32.totalorder %s46, %s48
    %p55 = scmp.eq.s32.totalorder %s17, 1
    %p56 = por %p54, %p55
    %p57 = scmp.ne.s32.totalorder %s48, %s49
    %p58 = scmp.eq.s32.totalorder %s17, 0
    %p59 = por %p57, %p58
    %p60 = scmp.ne.s32.totalorder %s48, %s49
    %p61 = scmp.eq.s32.totalorder %s18, 1
    %p62 = por %p60, %p61
    %p64 = scmp.ne.s32.totalorder %s49, %s63
    %p65 = scmp.eq.s32.totalorder %s18, 0
    %p66 = por %p64, %p65
    %s68 = sadd.s32 %s67, 1
    %p71 = scmp.eq.s32.totalorder %s12, 1
    %p72 = scmp.ne.s32.totalorder %s67, %s69
    %p73 = scmp.eq.s32.totalorder %s12, 0
    %p74 = por %p72, %p73
    %p75 = scmp.ne.s32.totalorder %s67, %s69
    %p76 = scmp.eq.s32.totalorder %s17, 1
    %p77 = por %p75, %p76
    %p78 = scmp.ne.s32.totalorder %s69, %s70
    %p79 = scmp.eq.s32.totalorder %s17, 0
    %p80 = por %p78, %p79
    %p81 = scmp.ne.s32.totalorder %s69, %s70
    %p82 = scmp.eq.s32.totalorder %s18, 1
    %p83 = por %p81, %p82
    %p85 = scmp.ne.s32.totalorder %s70, %s84
    %p86 = scmp.eq.s32.totalorder %s18, 0
    %p87 = por %p85, %p86
    %s89 = sadd.s32 %s88, 1
    %p92 = scmp.eq.s32.totalorder %s12, 1
    %p93 = scmp.ne.s32.totalorder %s88, %s90
    %p94 = scmp.eq.s32.totalorder %s12, 0
    %p95 = por %p93, %p94
    %p96 = scmp.ne.s32.totalorder %s88, %s90
    %p97 = scmp.eq.s32.totalorder %s17, 1
    %p98 = por %p96, %p97
    %p99 = scmp.ne.s32.totalorder %s90, %s91
    %p100 = scmp.eq.s32.totalorder %s17, 0
    %p101 = por %p99, %p100
    %p102 = scmp.ne.s32.totalorder %s90, %s91
    %p103 = scmp.eq.s32.totalorder %s18, 1
    %p104 = por %p102, %p103
    %p106 = scmp.ne.s32.totalorder %s91, %s105
    %p107 = scmp.eq.s32.totalorder %s18, 0
    %p108 = por %p106, %p107
    %s109 = ssub.s32 %s12, %s19
    %p110 = scmp.eq.s32.totalorder %s109, 0
    %s112 = sadd.s32 %s111, 1
    %s113 = scalar_select %p110, %s111, %s112
    %p116 = pneg %p110
    %p117 = scmp.eq.s32.totalorder %s12, 1
    %p118 = por %p116, %p117
    %p119 = scmp.ne.s32.totalorder %s111, %s114
    %p120 = scmp.eq.s32.totalorder %s12, 0
    %p121 = por %p119, %p120
    %p122 = scmp.ne.s32.totalorder %s111, %s114
    %p123 = scmp.eq.s32.totalorder %s17, 1
    %p124 = por %p122, %p123
    %p125 = scmp.ne.s32.totalorder %s114, %s115
    %p126 = scmp.eq.s32.totalorder %s17, 0
    %p127 = por %p125, %p126
    %p128 = scmp.ne.s32.totalorder %s114, %s115
    %p129 = scmp.eq.s32.totalorder %s18, 1
    %p130 = por %p128, %p129
    %p132 = scmp.ne.s32.totalorder %s115, %s131
    %p133 = scmp.eq.s32.totalorder %s18, 0
    %p134 = por %p132, %p133
    %s135 = ssub.s32 %s12, %s19
    %p136 = scmp.eq.s32.totalorder %s135, 0
    %s138 = sadd.s32 %s137, 1
    %s139 = scalar_select %p136, %s137, %s138
    %p142 = pneg %p136
    %p143 = scmp.eq.s32.totalorder %s12, 1
    %p144 = por %p142, %p143
    %p145 = scmp.ne.s32.totalorder %s137, %s140
    %p146 = scmp.eq.s32.totalorder %s12, 0
    %p147 = por %p145, %p146
    %p148 = scmp.ne.s32.totalorder %s137, %s140
    %p149 = scmp.eq.s32.totalorder %s17, 1
    %p150 = por %p148, %p149
    %p151 = scmp.ne.s32.totalorder %s140, %s141
    %p152 = scmp.eq.s32.totalorder %s17, 0
    %p153 = por %p151, %p152
    %p154 = scmp.ne.s32.totalorder %s140, %s141
    %p155 = scmp.eq.s32.totalorder %s18, 1
    %p156 = por %p154, %p155
    %p158 = scmp.ne.s32.totalorder %s141, %s157
    %p159 = scmp.eq.s32.totalorder %s18, 0
    %p160 = por %p158, %p159
    %p161 = scmp.le.s32.totalorder 1, %s12
    %p162 = scmp.lt.s32.totalorder %s12, 3
    %p163 = pnand %p161, %p162
    %p164 = pneg %p163
    // Predicated region
    $region9: #{down_forward.3} parent=5 // pred_check
      _
    $region10: #{down_forward.3} parent=5 // pred_check_branch
      %166 = sbr.rel (%p163) target = $region12
    $region11: #{down_forward.3} parent=5 // pred_region
      %s167 = ssub.s32 %s12, 1
      // Predicated region
      $region13: #{down_forward.3} parent=11 // pred_check
        %p168 = pneg %p59
      $region14: #{down_forward.3} parent=11 // pred_check_branch
        %170 = sbr.rel (%p168) target = $region16
      $region15: #{down_forward.3} parent=11 // pred_region
        _
      $region16: #{down_forward.3} parent=11 // pred_fallthru
        _
      // Predicated region
      $region17: #{down_forward.3} parent=11 // pred_check
        %p171 = pneg %p80
      $region18: #{down_forward.3} parent=11 // pred_check_branch
        %173 = sbr.rel (%p171) target = $region20
      $region19: #{down_forward.3} parent=11 // pred_region
        _
      $region20: #{down_forward.3} parent=11 // pred_fallthru
        _
      // Predicated region
      $region21: #{down_forward.3} parent=11 // pred_check
        %p174 = pneg %p101
      $region22: #{down_forward.3} parent=11 // pred_check_branch
        %176 = sbr.rel (%p174) target = $region24
      $region23: #{down_forward.3} parent=11 // pred_region
        _
      $region24: #{down_forward.3} parent=11 // pred_fallthru
        _
    $region12: #{down_forward.3} parent=5 // pred_fallthru
      _
    %p177 = scmp.lt.s32.totalorder %s12, 2
    // Predicated region
    $region25: #{down_forward.3} parent=5 // pred_check
      %p178 = pneg %p177
    $region26: #{down_forward.3} parent=5 // pred_check_branch
      %180 = sbr.rel (%p178) target = $region28
    $region27: #{down_forward.3} parent=5 // pred_region
      // Predicated region
      $region29: #{down_forward.3} parent=27 // pred_check
        %p181 = pneg %p32
      $region30: #{down_forward.3} parent=27 // pred_check_branch
        %183 = sbr.rel (%p181) target = $region32
      $region31: #{down_forward.3} parent=27 // pred_region
        %p184 = scmp.lt.s32.totalorder %s12, 1
        %s185 = scalar_select %p184, %s12, 1
        %s186 = smul.addr %s185, 8
        %s187 = smul.addr %s186, 4
        %s188 = scalar_lea.vmem %s0, %s187
      $region32: #{down_forward.3} parent=27 // pred_fallthru
        _
    $region28: #{down_forward.3} parent=5 // pred_fallthru
      _
    %p189 = scmp.le.s32.totalorder 1, %s12
    %p190 = scmp.lt.s32.totalorder %s12, 3
    %p191 = pnand %p189, %p190
    %p192 = pneg %p191
    // Predicated region
    $region33: #{down_forward.3} parent=5 // pred_check
      _
    $region34: #{down_forward.3} parent=5 // pred_check_branch
      %194 = sbr.rel (%p191) target = $region36
    $region35: #{down_forward.3} parent=5 // pred_region
      %s195 = ssub.s32 %s12, 1
      %p196 = scmp.lt.s32.totalorder %s17, 1
      %s197 = scalar_select %p196, %s17, 1
      %s198 = smul.addr %s197, 8
      %s199 = smul.addr %s198, 4
      %s200 = scalar_lea.vmem %s0, %s199
      %p201 = pneg %p38
      %p202 = pneg %p35
      %p203 = pneg %p59
      %p204 = pneg %p56
      %p205 = pneg %p80
      %p206 = pneg %p77
      %p207 = pneg %p101
      %p208 = pneg %p98
      %p209 = pneg %p127
      %p210 = pneg %p124
      %p211 = scmp.lt.s32.totalorder %s17, 1
      %s212 = scalar_select %p211, %s17, 1
      %s213 = smul.addr %s212, 8
      %s214 = smul.addr %s213, 4
      %s215 = scalar_lea.vmem %s4, %s214
      %p216 = pneg %p153
      %p217 = pneg %p150
      %p218 = scmp.lt.s32.totalorder %s17, 1
      %s219 = scalar_select %p218, %s17, 1
      %s220 = smul.addr %s219, 2
      %s221 = scalar_lea.vmem %s5, %s220
      %p222 = scmp.lt.s32.totalorder %s17, 1
      %s223 = scalar_select %p222, %s17, 1
      %s224 = smul.addr %s223, 8
      %s225 = smul.addr %s224, 4
      %s226 = scalar_lea.vmem %s0, %s225
      %p227 = scmp.lt.s32.totalorder %s17, 1
      %s228 = scalar_select %p227, %s17, 1
      %s229 = smul.addr %s228, 8
      %s230 = smul.addr %s229, 4
      %s231 = scalar_lea.vmem %s4, %s230
      %p232 = scmp.lt.s32.totalorder %s17, 1
      %s233 = scalar_select %p232, %s17, 1
      %s234 = smul.addr %s233, 2
      %s235 = scalar_lea.vmem %s5, %s234
      %v237 = vld [vmem:[%s226] sm:$0xf]
      %v238 = vld [vmem:[%s226 + $0x4] sm:$0xf]
      %v239 = vld [vmem:[%s226 + $0x8] sm:$0xf]
      %v240 = vld [vmem:[%s226 + $0xc] sm:$0xf]
      %v241 = vld [vmem:[%s226 + $0x10] sm:$0xf]
      %v242 = vld [vmem:[%s226 + $0x14] sm:$0xf]
      %v243 = vld [vmem:[%s226 + $0x18] sm:$0xf]
      %v244 = vld [vmem:[%s226 + $0x1c] sm:$0xf]
      %v245 = vunpack.c.l.bf16 %v237
      %v246 = vunpack.c.l.bf16 %v238
      %v247 = vunpack.c.l.bf16 %v239
      %v248 = vunpack.c.l.bf16 %v240
      %v249 = vunpack.c.l.bf16 %v241
      %v250 = vunpack.c.l.bf16 %v242
      %v251 = vunpack.c.l.bf16 %v243
      %v252 = vunpack.c.l.bf16 %v244
      %v253 = vld [vmem:[%s1] sm:$0x1]
      %v255 = vlaneseq
      %v256 = vshrl.u32 %v255, 7
      %v257 = vsub.s32 0, %v256
      %v258 = vrot.slane %v253, %v257
      %v260 = vmul.f32 %v245, %v258
      %v261 = vmul.f32 %v246, %v258
      %v262 = vmul.f32 %v247, %v258
      %v263 = vmul.f32 %v248, %v258
      %v264 = vmul.f32 %v249, %v258
      %v265 = vmul.f32 %v250, %v258
      %v266 = vmul.f32 %v251, %v258
      %v267 = vmul.f32 %v252, %v258
      %v268 = vld [vmem:[%s2] sm:$0x1]
      %v270 = vlaneseq
      %v271 = vshrl.u32 %v270, 7
      %v272 = vsub.s32 0, %v271
      %v273 = vrot.slane %v268, %v272
      %v275 = vadd.f32 %v260, %v273
      %v276 = vadd.f32 %v261, %v273
      %v277 = vadd.f32 %v262, %v273
      %v278 = vadd.f32 %v263, %v273
      %v279 = vadd.f32 %v264, %v273
      %v280 = vadd.f32 %v265, %v273
      %v281 = vadd.f32 %v266, %v273
      %v282 = vadd.f32 %v267, %v273
      %v283 = vmax.f32 %v275, 0.0
      %v284 = vmax.f32 %v276, 0.0
      %v285 = vmax.f32 %v277, 0.0
      %v286 = vmax.f32 %v278, 0.0
      %v287 = vmax.f32 %v279, 0.0
      %v288 = vmax.f32 %v280, 0.0
      %v289 = vmax.f32 %v281, 0.0
      %v290 = vmax.f32 %v282, 0.0
      %vm291 = vcmask 60416
      %292 = vst.msk [vmem:[#allocation2] sm:$0xf] %vm291, 0
      %vm293 = vcmask 57344
      %294 = vst.msk [vmem:[#allocation2 + $0x4] sm:$0x1] %vm293, 0
      %s295 = scalar_lea.vmem [#allocation2], 72
      %296 = vst.msk [vmem:[%s295] sm:$0xf] %vm291, 0
      %297 = vst.msk [vmem:[%s295 + $0x4] sm:$0x1] %vm293, 0
      %s298 = scalar_lea.vmem [#allocation2], 8
      %vm299 = vcmask 57344
      %vm300 = vsmask.f32 256
      %vm301 = vmand %vm299, %vm300
      %v302 = vld [vmem:[%s298] sm:$0x1]
      %v303 = vsel %vm301, 0, %v302
      %304 = vst [vmem:[%s298] sm:$0x1] %v303
      %v305 = vld [vmem:[%s298 + $0x8] sm:$0x1]
      %v306 = vsel %vm301, 0, %v305
      %307 = vst [vmem:[%s298 + $0x8] sm:$0x1] %v306
      %v308 = vld [vmem:[%s298 + $0x10] sm:$0x1]
      %v309 = vsel %vm301, 0, %v308
      %310 = vst [vmem:[%s298 + $0x10] sm:$0x1] %v309
      %v311 = vld [vmem:[%s298 + $0x18] sm:$0x1]
      %v312 = vsel %vm301, 0, %v311
      %313 = vst [vmem:[%s298 + $0x18] sm:$0x1] %v312
      %v314 = vld [vmem:[%s298 + $0x20] sm:$0x1]
      %v315 = vsel %vm301, 0, %v314
      %316 = vst [vmem:[%s298 + $0x20] sm:$0x1] %v315
      %v317 = vld [vmem:[%s298 + $0x28] sm:$0x1]
      %v318 = vsel %vm301, 0, %v317
      %319 = vst [vmem:[%s298 + $0x28] sm:$0x1] %v318
      %v320 = vld [vmem:[%s298 + $0x30] sm:$0x1]
      %v321 = vsel %vm301, 0, %v320
      %322 = vst [vmem:[%s298 + $0x30] sm:$0x1] %v321
      %v323 = vld [vmem:[%s298 + $0x38] sm:$0x1]
      %v324 = vsel %vm301, 0, %v323
      %325 = vst [vmem:[%s298 + $0x38] sm:$0x1] %v324
      %vm326 = vsmask.f32 7938
      %vm327 = vmand %vm299, %vm326
      %v328 = vld [vmem:[%s298 + $0x4] sm:$0x1]
      %v329 = vsel %vm327, 0, %v328
      %330 = vst [vmem:[%s298 + $0x4] sm:$0x1] %v329
      %v331 = vld [vmem:[%s298 + $0xc] sm:$0x1]
      %v332 = vsel %vm327, 0, %v331
      %333 = vst [vmem:[%s298 + $0xc] sm:$0x1] %v332
      %v334 = vld [vmem:[%s298 + $0x14] sm:$0x1]
      %v335 = vsel %vm327, 0, %v334
      %336 = vst [vmem:[%s298 + $0x14] sm:$0x1] %v335
      %v337 = vld [vmem:[%s298 + $0x1c] sm:$0x1]
      %v338 = vsel %vm327, 0, %v337
      %339 = vst [vmem:[%s298 + $0x1c] sm:$0x1] %v338
      %v340 = vld [vmem:[%s298 + $0x24] sm:$0x1]
      %v341 = vsel %vm327, 0, %v340
      %342 = vst [vmem:[%s298 + $0x24] sm:$0x1] %v341
      %v343 = vld [vmem:[%s298 + $0x2c] sm:$0x1]
      %v344 = vsel %vm327, 0, %v343
      %345 = vst [vmem:[%s298 + $0x2c] sm:$0x1] %v344
      %v346 = vld [vmem:[%s298 + $0x34] sm:$0x1]
      %v347 = vsel %vm327, 0, %v346
      %348 = vst [vmem:[%s298 + $0x34] sm:$0x1] %v347
      %v349 = vld [vmem:[%s298 + $0x3c] sm:$0x1]
      %v350 = vsel %vm327, 0, %v349
      %351 = vst [vmem:[%s298 + $0x3c] sm:$0x1] %v350
      %v352 = vpack.c.bf16 %v283, %v283
      %v353 = vpack.c.bf16 %v284, %v284
      %v354 = vpack.c.bf16 %v285, %v285
      %v355 = vpack.c.bf16 %v286, %v286
      %v356 = vpack.c.bf16 %v287, %v287
      %v357 = vpack.c.bf16 %v288, %v288
      %v358 = vpack.c.bf16 %v289, %v289
      %v359 = vpack.c.bf16 %v290, %v290
      %v368 = vunpack.c.l.b16 %v352
      %v369 = vunpack.c.l.b16 %v353
      %v370 = vunpack.c.l.b16 %v354
      %v371 = vunpack.c.l.b16 %v355
      %v372 = vunpack.c.l.b16 %v356
      %v373 = vunpack.c.l.b16 %v357
      %v374 = vunpack.c.l.b16 %v358
      %v375 = vunpack.c.l.b16 %v359
      %v376 = vpack.c.b16 %v368, %v368
      %v377 = vpack.c.b16 %v369, %v369
      %v378 = vpack.c.b16 %v370, %v370
      %v379 = vpack.c.b16 %v371, %v371
      %v380 = vpack.c.b16 %v372, %v372
      %v381 = vpack.c.b16 %v373, %v373
      %v382 = vpack.c.b16 %v374, %v374
      %v383 = vpack.c.b16 %v375, %v375
      %v385 = vshrl.u32 %v376, 16
      %v387 = vrot.slane %v385, 7
      %v388 = vshll.u32 %v376, 16
      %v390 = vor.u32 %v387, %v388
      %v391 = vrot.slane %v387, 4
      %v393 = vshrl.u32 %v377, 16
      %v395 = vrot.slane %v393, 7
      %v396 = vshll.u32 %v377, 16
      %v398 = vor.u32 %v395, %v396
      %v399 = vrot.slane %v395, 4
      %v401 = vshrl.u32 %v378, 16
      %v403 = vrot.slane %v401, 7
      %v404 = vshll.u32 %v378, 16
      %v406 = vor.u32 %v403, %v404
      %v407 = vrot.slane %v403, 4
      %v409 = vshrl.u32 %v379, 16
      %v411 = vrot.slane %v409, 7
      %v412 = vshll.u32 %v379, 16
      %v414 = vor.u32 %v411, %v412
      %v415 = vrot.slane %v411, 4
      %v417 = vshrl.u32 %v380, 16
      %v419 = vrot.slane %v417, 7
      %v420 = vshll.u32 %v380, 16
      %v422 = vor.u32 %v419, %v420
      %v423 = vrot.slane %v419, 4
      %v425 = vshrl.u32 %v381, 16
      %v427 = vrot.slane %v425, 7
      %v428 = vshll.u32 %v381, 16
      %v430 = vor.u32 %v427, %v428
      %v431 = vrot.slane %v427, 4
      %v433 = vshrl.u32 %v382, 16
      %v435 = vrot.slane %v433, 7
      %v436 = vshll.u32 %v382, 16
      %v438 = vor.u32 %v435, %v436
      %v439 = vrot.slane %v435, 4
      %v441 = vshrl.u32 %v383, 16
      %v443 = vrot.slane %v441, 7
      %v444 = vshll.u32 %v383, 16
      %v446 = vor.u32 %v443, %v444
      %v447 = vrot.slane %v443, 4
      %vm464 = vcmask 60416
      %vm465 = vmand %vm464, %vm326
      %v466 = vld [vmem:[%s298] sm:$0xf]
      %v467 = vsel %vm465, %v390, %v466
      %468 = vst [vmem:[%s298] sm:$0xf] %v467
      %v469 = vld [vmem:[%s298 + $0x4] sm:$0x1]
      %v470 = vsel %vm301, %v391, %v469
      %471 = vst [vmem:[%s298 + $0x4] sm:$0x1] %v470
      %v472 = vld [vmem:[%s298 + $0x8] sm:$0xf]
      %v473 = vsel %vm465, %v398, %v472
      %474 = vst [vmem:[%s298 + $0x8] sm:$0xf] %v473
      %v475 = vld [vmem:[%s298 + $0xc] sm:$0x1]
      %v476 = vsel %vm301, %v399, %v475
      %477 = vst [vmem:[%s298 + $0xc] sm:$0x1] %v476
      %v478 = vld [vmem:[%s298 + $0x10] sm:$0xf]
      %v479 = vsel %vm465, %v406, %v478
      %480 = vst [vmem:[%s298 + $0x10] sm:$0xf] %v479
      %v481 = vld [vmem:[%s298 + $0x14] sm:$0x1]
      %v482 = vsel %vm301, %v407, %v481
      %483 = vst [vmem:[%s298 + $0x14] sm:$0x1] %v482
      %v484 = vld [vmem:[%s298 + $0x18] sm:$0xf]
      %v485 = vsel %vm465, %v414, %v484
      %486 = vst [vmem:[%s298 + $0x18] sm:$0xf] %v485
      %v487 = vld [vmem:[%s298 + $0x1c] sm:$0x1]
      %v488 = vsel %vm301, %v415, %v487
      %489 = vst [vmem:[%s298 + $0x1c] sm:$0x1] %v488
      %v490 = vld [vmem:[%s298 + $0x20] sm:$0xf]
      %v491 = vsel %vm465, %v422, %v490
      %492 = vst [vmem:[%s298 + $0x20] sm:$0xf] %v491
      %v493 = vld [vmem:[%s298 + $0x24] sm:$0x1]
      %v494 = vsel %vm301, %v423, %v493
      %495 = vst [vmem:[%s298 + $0x24] sm:$0x1] %v494
      %v496 = vld [vmem:[%s298 + $0x28] sm:$0xf]
      %v497 = vsel %vm465, %v430, %v496
      %498 = vst [vmem:[%s298 + $0x28] sm:$0xf] %v497
      %v499 = vld [vmem:[%s298 + $0x2c] sm:$0x1]
      %v500 = vsel %vm301, %v431, %v499
      %501 = vst [vmem:[%s298 + $0x2c] sm:$0x1] %v500
      %v502 = vld [vmem:[%s298 + $0x30] sm:$0xf]
      %v503 = vsel %vm465, %v438, %v502
      %504 = vst [vmem:[%s298 + $0x30] sm:$0xf] %v503
      %v505 = vld [vmem:[%s298 + $0x34] sm:$0x1]
      %v506 = vsel %vm301, %v439, %v505
      %507 = vst [vmem:[%s298 + $0x34] sm:$0x1] %v506
      %v508 = vld [vmem:[%s298 + $0x38] sm:$0xf]
      %v509 = vsel %vm465, %v446, %v508
      %510 = vst [vmem:[%s298 + $0x38] sm:$0xf] %v509
      %v511 = vld [vmem:[%s298 + $0x3c] sm:$0x1]
      %v512 = vsel %vm301, %v447, %v511
      %513 = vst [vmem:[%s298 + $0x3c] sm:$0x1] %v512
      %v514 = vld [vmem:[#allocation2] sm:$0xf]
      %v515 = vld [vmem:[#allocation2 + $0x8] sm:$0xf]
      %v516 = vld [vmem:[#allocation2 + $0x10] sm:$0xf]
      %v517 = vld [vmem:[#allocation2 + $0x18] sm:$0xf]
      %v518 = vld [vmem:[#allocation2 + $0x20] sm:$0xf]
      %v519 = vld [vmem:[#allocation2 + $0x28] sm:$0xf]
      %v520 = vld [vmem:[#allocation2 + $0x30] sm:$0xf]
      %v521 = vld [vmem:[#allocation2 + $0x38] sm:$0xf]
      %v522 = vld [vmem:[#allocation2 + $0x40] sm:$0xf]
      %v523 = vld [vmem:[#allocation2 + $0x48] sm:$0xf]
      %v524 = vld [vmem:[#allocation2 + $0x4] sm:$0x1]
      %v525 = vld [vmem:[#allocation2 + $0xc] sm:$0x1]
      %v526 = vld [vmem:[#allocation2 + $0x14] sm:$0x1]
      %v527 = vld [vmem:[#allocation2 + $0x1c] sm:$0x1]
      %v528 = vld [vmem:[#allocation2 + $0x24] sm:$0x1]
      %v529 = vld [vmem:[#allocation2 + $0x2c] sm:$0x1]
      %v530 = vld [vmem:[#allocation2 + $0x34] sm:$0x1]
      %v531 = vld [vmem:[#allocation2 + $0x3c] sm:$0x1]
      %v532 = vld [vmem:[#allocation2 + $0x44] sm:$0x1]
      %v533 = vld [vmem:[#allocation2 + $0x4c] sm:$0x1]
      %v534 = vld [vmem:[#allocation2] sm:$0xe]
      %v535 = vld [vmem:[#allocation2 + $0x8] sm:$0xe]
      %v536 = vld [vmem:[#allocation2 + $0x10] sm:$0xe]
      %v537 = vld [vmem:[#allocation2 + $0x18] sm:$0xe]
      %v538 = vld [vmem:[#allocation2 + $0x20] sm:$0xe]
      %v539 = vld [vmem:[#allocation2 + $0x28] sm:$0xe]
      %v540 = vld [vmem:[#allocation2 + $0x30] sm:$0xe]
      %v541 = vld [vmem:[#allocation2 + $0x38] sm:$0xe]
      %v542 = vld [vmem:[#allocation2 + $0x40] sm:$0xe]
      %v543 = vld [vmem:[#allocation2 + $0x48] sm:$0xe]
      %vm544 = vsmask.f32 3328
      %vm545 = vsmask.f32 7440
      %vm546 = vmor %vm544, %vm545
      %v548 = vshrl.u32 %v514, 16
      %v550 = vrot.slane %v548, 4
      %v551 = vshll.u32 %v514, 16
      %v553 = vrot.slane %v551, 5
      %v554 = vor.u32 %v550, %v553
      %v555 = vrot.slane %v554, 4
      %v557 = vshll.u32 %v524, 16
      %v559 = vrot.slane %v557, 5
      %v560 = vsel %vm546, %v555, %v559
      %v562 = vshrl.u32 %v515, 16
      %v564 = vrot.slane %v562, 4
      %v565 = vshll.u32 %v515, 16
      %v567 = vrot.slane %v565, 5
      %v568 = vor.u32 %v564, %v567
      %v569 = vrot.slane %v568, 4
      %v571 = vshll.u32 %v525, 16
      %v573 = vrot.slane %v571, 5
      %v574 = vsel %vm546, %v569, %v573
      %v576 = vshrl.u32 %v516, 16
      %v578 = vrot.slane %v576, 4
      %v579 = vshll.u32 %v516, 16
      %v581 = vrot.slane %v579, 5
      %v582 = vor.u32 %v578, %v581
      %v583 = vrot.slane %v582, 4
      %v585 = vshll.u32 %v526, 16
      %v587 = vrot.slane %v585, 5
      %v588 = vsel %vm546, %v583, %v587
      %v590 = vshrl.u32 %v517, 16
      %v592 = vrot.slane %v590, 4
      %v593 = vshll.u32 %v517, 16
      %v595 = vrot.slane %v593, 5
      %v596 = vor.u32 %v592, %v595
      %v597 = vrot.slane %v596, 4
      %v599 = vshll.u32 %v527, 16
      %v601 = vrot.slane %v599, 5
      %v602 = vsel %vm546, %v597, %v601
      %v604 = vshrl.u32 %v518, 16
      %v606 = vrot.slane %v604, 4
      %v607 = vshll.u32 %v518, 16
      %v609 = vrot.slane %v607, 5
      %v610 = vor.u32 %v606, %v609
      %v611 = vrot.slane %v610, 4
      %v613 = vshll.u32 %v528, 16
      %v615 = vrot.slane %v613, 5
      %v616 = vsel %vm546, %v611, %v615
      %v618 = vshrl.u32 %v519, 16
      %v620 = vrot.slane %v618, 4
      %v621 = vshll.u32 %v519, 16
      %v623 = vrot.slane %v621, 5
      %v624 = vor.u32 %v620, %v623
      %v625 = vrot.slane %v624, 4
      %v627 = vshll.u32 %v529, 16
      %v629 = vrot.slane %v627, 5
      %v630 = vsel %vm546, %v625, %v629
      %v632 = vshrl.u32 %v520, 16
      %v634 = vrot.slane %v632, 4
      %v635 = vshll.u32 %v520, 16
      %v637 = vrot.slane %v635, 5
      %v638 = vor.u32 %v634, %v637
      %v639 = vrot.slane %v638, 4
      %v641 = vshll.u32 %v530, 16
      %v643 = vrot.slane %v641, 5
      %v644 = vsel %vm546, %v639, %v643
      %v646 = vshrl.u32 %v521, 16
      %v648 = vrot.slane %v646, 4
      %v649 = vshll.u32 %v521, 16
      %v651 = vrot.slane %v649, 5
      %v652 = vor.u32 %v648, %v651
      %v653 = vrot.slane %v652, 4
      %v655 = vshll.u32 %v531, 16
      %v657 = vrot.slane %v655, 5
      %v658 = vsel %vm546, %v653, %v657
      %vm675 = vcmask 1042432
      %vm676 = vcmask 1046532
      %vm677 = vmor %vm675, %vm676
      %v678 = vrot.slane %v534, 5
      %v679 = vrot.slane %v678, 4
      %v680 = vrot.slane %v524, 5
      %v681 = vsel %vm677, %v679, %v680
      %v682 = vrot.slane %v535, 5
      %v683 = vrot.slane %v682, 4
      %v684 = vrot.slane %v525, 5
      %v685 = vsel %vm677, %v683, %v684
      %v686 = vrot.slane %v536, 5
      %v687 = vrot.slane %v686, 4
      %v688 = vrot.slane %v526, 5
      %v689 = vsel %vm677, %v687, %v688
      %v690 = vrot.slane %v537, 5
      %v691 = vrot.slane %v690, 4
      %v692 = vrot.slane %v527, 5
      %v693 = vsel %vm677, %v691, %v692
      %v694 = vrot.slane %v538, 5
      %v695 = vrot.slane %v694, 4
      %v696 = vrot.slane %v528, 5
      %v697 = vsel %vm677, %v695, %v696
      %v698 = vrot.slane %v539, 5
      %v699 = vrot.slane %v698, 4
      %v700 = vrot.slane %v529, 5
      %v701 = vsel %vm677, %v699, %v700
      %v702 = vrot.slane %v540, 5
      %v703 = vrot.slane %v702, 4
      %v704 = vrot.slane %v530, 5
      %v705 = vsel %vm677, %v703, %v704
      %v706 = vrot.slane %v541, 5
      %v707 = vrot.slane %v706, 4
      %v708 = vrot.slane %v531, 5
      %v709 = vsel %vm677, %v707, %v708
      %v711 = vshrl.u32 %v522, 16
      %v713 = vrot.slane %v711, 4
      %v714 = vshll.u32 %v522, 16
      %v716 = vrot.slane %v714, 5
      %v717 = vor.u32 %v713, %v716
      %v718 = vrot.slane %v717, 4
      %v720 = vshll.u32 %v532, 16
      %v722 = vrot.slane %v720, 5
      %v723 = vsel %vm546, %v718, %v722
      %v726 = vrot.slane %v542, 5
      %v727 = vrot.slane %v726, 4
      %v728 = vrot.slane %v532, 5
      %v729 = vsel %vm677, %v727, %v728
      %v731 = vshrl.u32 %v523, 16
      %v733 = vrot.slane %v731, 4
      %v734 = vshll.u32 %v523, 16
      %v736 = vrot.slane %v734, 5
      %v737 = vor.u32 %v733, %v736
      %v738 = vrot.slane %v737, 4
      %v740 = vshll.u32 %v533, 16
      %v742 = vrot.slane %v740, 5
      %v743 = vsel %vm546, %v738, %v742
      %v746 = vrot.slane %v543, 5
      %v747 = vrot.slane %v746, 4
      %v748 = vrot.slane %v533, 5
      %v749 = vsel %vm677, %v747, %v748
      %v758 = vunpack.c.l.b16 %v514
      %v759 = vunpack.c.l.b16 %v515
      %v760 = vunpack.c.l.b16 %v516
      %v761 = vunpack.c.l.b16 %v517
      %v762 = vunpack.c.l.b16 %v518
      %v763 = vunpack.c.l.b16 %v519
      %v764 = vunpack.c.l.b16 %v520
      %v765 = vunpack.c.l.b16 %v521
      %v766 = vpack.c.b16 %v759, %v758
      %v767 = vpack.c.b16 %v761, %v760
      %v768 = vpack.c.b16 %v763, %v762
      %v769 = vpack.c.b16 %v765, %v764
      %v770 = vunpack.c.l.b16 %v560
      %v771 = vunpack.c.l.b16 %v574
      %v772 = vunpack.c.l.b16 %v588
      %v773 = vunpack.c.l.b16 %v602
      %v774 = vunpack.c.l.b16 %v616
      %v775 = vunpack.c.l.b16 %v630
      %v776 = vunpack.c.l.b16 %v644
      %v777 = vunpack.c.l.b16 %v658
      %v778 = vpack.c.b16 %v771, %v770
      %v779 = vpack.c.b16 %v773, %v772
      %v780 = vpack.c.b16 %v775, %v774
      %v781 = vpack.c.b16 %v777, %v776
      %782 = vrot.lane.b32.xlu0 %v778, 8
      %v783 = vpop.permute.xlu0 %782
      %784 = vrot.lane.b32.xlu0 %v779, 8
      %v785 = vpop.permute.xlu0 %784
      %786 = vrot.lane.b32.xlu0 %v780, 8
      %v787 = vpop.permute.xlu0 %786
      %788 = vrot.lane.b32.xlu0 %v781, 8
      %v789 = vpop.permute.xlu0 %788
      %v790 = vunpack.c.l.b16 %v681
      %v791 = vunpack.c.l.b16 %v685
      %v792 = vunpack.c.l.b16 %v689
      %v793 = vunpack.c.l.b16 %v693
      %v794 = vunpack.c.l.b16 %v697
      %v795 = vunpack.c.l.b16 %v701
      %v796 = vunpack.c.l.b16 %v705
      %v797 = vunpack.c.l.b16 %v709
      %v798 = vpack.c.b16 %v791, %v790
      %v799 = vpack.c.b16 %v793, %v792
      %v800 = vpack.c.b16 %v795, %v794
      %v801 = vpack.c.b16 %v797, %v796
      %802 = vrot.lane.b32.xlu0 %v798, 16
      %v803 = vpop.permute.xlu0 %802
      %804 = vrot.lane.b32.xlu0 %v799, 16
      %v805 = vpop.permute.xlu0 %804
      %806 = vrot.lane.b32.xlu0 %v800, 16
      %v807 = vpop.permute.xlu0 %806
      %808 = vrot.lane.b32.xlu0 %v801, 16
      %v809 = vpop.permute.xlu0 %808
      %v811 = vunpack.c.l.b16 %v522
      %v812 = vpack.c.b16 %v760, %v759
      %v813 = vpack.c.b16 %v762, %v761
      %v814 = vpack.c.b16 %v764, %v763
      %v815 = vpack.c.b16 %v811, %v765
      %816 = vrot.lane.b32.xlu0 %v812, 24
      %v817 = vpop.permute.xlu0 %816
      %818 = vrot.lane.b32.xlu0 %v813, 24
      %v819 = vpop.permute.xlu0 %818
      %820 = vrot.lane.b32.xlu0 %v814, 24
      %v821 = vpop.permute.xlu0 %820
      %822 = vrot.lane.b32.xlu0 %v815, 24
      %v823 = vpop.permute.xlu0 %822
      %v824 = vunpack.c.l.b16 %v723
      %v825 = vpack.c.b16 %v772, %v771
      %v826 = vpack.c.b16 %v774, %v773
      %v827 = vpack.c.b16 %v776, %v775
      %v828 = vpack.c.b16 %v824, %v777
      %829 = vrot.lane.b32.xlu0 %v825, 32
      %v830 = vpop.permute.xlu0 %829
      %831 = vrot.lane.b32.xlu0 %v826, 32
      %v832 = vpop.permute.xlu0 %831
      %833 = vrot.lane.b32.xlu0 %v827, 32
      %v834 = vpop.permute.xlu0 %833
      %835 = vrot.lane.b32.xlu0 %v828, 32
      %v836 = vpop.permute.xlu0 %835
      %v837 = vunpack.c.l.b16 %v729
      %v838 = vpack.c.b16 %v792, %v791
      %v839 = vpack.c.b16 %v794, %v793
      %v840 = vpack.c.b16 %v796, %v795
      %v841 = vpack.c.b16 %v837, %v797
      %842 = vrot.lane.b32.xlu0 %v838, 40
      %v843 = vpop.permute.xlu0 %842
      %844 = vrot.lane.b32.xlu0 %v839, 40
      %v845 = vpop.permute.xlu0 %844
      %846 = vrot.lane.b32.xlu0 %v840, 40
      %v847 = vpop.permute.xlu0 %846
      %848 = vrot.lane.b32.xlu0 %v841, 40
      %v849 = vpop.permute.xlu0 %848
      %v851 = vunpack.c.l.b16 %v523
      %v852 = vpack.c.b16 %v851, %v811
      %853 = vrot.lane.b32.xlu0 %v767, 48
      %v854 = vpop.permute.xlu0 %853
      %855 = vrot.lane.b32.xlu0 %v768, 48
      %v856 = vpop.permute.xlu0 %855
      %857 = vrot.lane.b32.xlu0 %v769, 48
      %v858 = vpop.permute.xlu0 %857
      %859 = vrot.lane.b32.xlu0 %v852, 48
      %v860 = vpop.permute.xlu0 %859
      %v861 = vunpack.c.l.b16 %v743
      %v862 = vpack.c.b16 %v861, %v824
      %863 = vrot.lane.b32.xlu0 %v779, 56
      %v864 = vpop.permute.xlu0 %863
      %865 = vrot.lane.b32.xlu0 %v780, 56
      %v866 = vpop.permute.xlu0 %865
      %867 = vrot.lane.b32.xlu0 %v781, 56
      %v868 = vpop.permute.xlu0 %867
      %869 = vrot.lane.b32.xlu0 %v862, 56
      %v870 = vpop.permute.xlu0 %869
      %v871 = vunpack.c.l.b16 %v749
      %v872 = vpack.c.b16 %v871, %v837
      %873 = vrot.lane.b32.xlu0 %v799, 64
      %v874 = vpop.permute.xlu0 %873
      %875 = vrot.lane.b32.xlu0 %v800, 64
      %v876 = vpop.permute.xlu0 %875
      %877 = vrot.lane.b32.xlu0 %v801, 64
      %v878 = vpop.permute.xlu0 %877
      %879 = vrot.lane.b32.xlu0 %v872, 64
      %v880 = vpop.permute.xlu0 %879
      %vm881 = vcmask 64512
      %v884 = vsel %vm881, %v766, %v783
      %v887 = vsel %vm881, %v767, %v785
      %v890 = vsel %vm881, %v768, %v787
      %v893 = vsel %vm881, %v769, %v789
      %vm894 = vcmask 130048
      %v896 = vsel %vm894, %v884, %v803
      %v898 = vsel %vm894, %v887, %v805
      %v900 = vsel %vm894, %v890, %v807
      %v902 = vsel %vm894, %v893, %v809
      %vm903 = vcmask 195584
      %v905 = vsel %vm903, %v896, %v817
      %v907 = vsel %vm903, %v898, %v819
      %v909 = vsel %vm903, %v900, %v821
      %v911 = vsel %vm903, %v902, %v823
      %vm912 = vcmask 261120
      %v914 = vsel %vm912, %v905, %v830
      %v916 = vsel %vm912, %v907, %v832
      %v918 = vsel %vm912, %v909, %v834
      %v920 = vsel %vm912, %v911, %v836
      %vm921 = vcmask 326656
      %v923 = vsel %vm921, %v914, %v843
      %v925 = vsel %vm921, %v916, %v845
      %v927 = vsel %vm921, %v918, %v847
      %v929 = vsel %vm921, %v920, %v849
      %vm930 = vcmask 392192
      %v932 = vsel %vm930, %v923, %v854
      %v934 = vsel %vm930, %v925, %v856
      %v936 = vsel %vm930, %v927, %v858
      %v938 = vsel %vm930, %v929, %v860
      %vm939 = vcmask 457728
      %v941 = vsel %vm939, %v932, %v864
      %v943 = vsel %vm939, %v934, %v866
      %v945 = vsel %vm939, %v936, %v868
      %v947 = vsel %vm939, %v938, %v870
      %vm948 = vcmask 523264
      %v950 = vsel %vm948, %v941, %v874
      %v952 = vsel %vm948, %v943, %v876
      %v954 = vsel %vm948, %v945, %v878
      %v956 = vsel %vm948, %v947, %v880
      %v957 = vld [vmem:[%s3] sm:$0xf]
      %v958 = vld [vmem:[%s3 + $0x4] sm:$0xf]
      %v959 = vld [vmem:[%s3 + $0x8] sm:$0xf]
      %v960 = vld [vmem:[%s3 + $0xc] sm:$0xf]
      %v961 = vld [vmem:[%s3 + $0x10] sm:$0xf]
      %v962 = vld [vmem:[%s3 + $0x14] sm:$0xf]
      %v963 = vld [vmem:[%s3 + $0x18] sm:$0xf]
      %v964 = vld [vmem:[%s3 + $0x1c] sm:$0xf]
      %v965 = vld [vmem:[%s3 + $0x20] sm:$0xf]
      %v975 = vunpack.c.l.b16 %v957
      %v976 = vunpack.c.l.b16 %v958
      %v977 = vunpack.c.l.b16 %v959
      %v978 = vunpack.c.l.b16 %v960
      %v979 = vunpack.c.l.b16 %v961
      %v980 = vunpack.c.l.b16 %v962
      %v981 = vunpack.c.l.b16 %v963
      %v982 = vunpack.c.l.b16 %v964
      %v983 = vunpack.c.l.b16 %v965
      %v984 = vpack.c.b16 %v976, %v975
      %v985 = vpack.c.b16 %v978, %v977
      %v986 = vpack.c.b16 %v980, %v979
      %v987 = vpack.c.b16 %v982, %v981
      %v988 = vpack.c.b16 %v983, %v983
      %vm993 = vcmask 588800
      %v994 = vsel %vm993, %v950, 0
      %v996 = vsel %vm993, %v952, 0
      %v998 = vsel %vm993, %v954, 0
      %v1000 = vsel %vm993, %v956, 0
      %vm1002 = vcmask 1043456
      %v1004 = vsel %vm1002, %v988, 0
      %1006 = vmatprep.subr.bf16.mxu0 0
      %1007 = vmatpush1.bf16.msra.mxu0 %v984
      %1008 = vmatprep.subr.bf16.mxu0 0
      %1009 = vmatpush1.bf16.msra.mxu0 %v985
      %1010 = vmatprep.subr.bf16.mxu0 0
      %1011 = vmatpush1.bf16.msra.mxu0 %v986
      %1012 = vmatprep.subr.bf16.mxu0 0
      %1013 = vmatpush1.bf16.msra.mxu0 %v987
      %1014 = vmatprep.subr.bf16.mxu0 0
      %1015 = vmatpush1.bf16.msra.mxu0 %v1004
      %1016 = vmatprep.subr.bf16.mxu0 0
      %1017 = vmatpush1.bf16.msra.mxu0 0
      %1018 = vmatprep.subr.bf16.mxu0 0
      %1019 = vmatpush1.bf16.msra.mxu0 0
      %1020 = vmatprep.subr.bf16.mxu0 0
      %1021 = vmatpush1.bf16.msra.mxu0 0
      %1022 = vmatprep.subr.bf16.mxu0 0
      %1023 = vmatpush1.bf16.msra.mxu0 0
      %1024 = vmatprep.subr.bf16.mxu0 0
      %1025 = vmatpush1.bf16.msra.mxu0 0
      %1026 = vmatprep.subr.bf16.mxu0 0
      %1027 = vmatpush1.bf16.msra.mxu0 0
      %1028 = vmatprep.subr.bf16.mxu0 0
      %1029 = vmatpush1.bf16.msra.mxu0 0
      %1030 = vmatprep.subr.bf16.mxu0 0
      %1031 = vmatpush1.bf16.msra.mxu0 0
      %1032 = vmatprep.subr.bf16.mxu0 0
      %1033 = vmatpush1.bf16.msra.mxu0 0
      %1034 = vmatprep.subr.bf16.mxu0 0
      %1035 = vmatpush1.bf16.msra.mxu0 0
      %1036 = vmatprep.subr.bf16.mxu0 0
      %1037 = vmatpush1.bf16.msra.mxu0 0
      %1038 = vmatprep.mubr.bf16.mxu0 0
      %1039 = vmatmul.mubr.bf16.gmra.mrb[0].mxu0 %v994
      %v1040 = vpop.f32.mrb[0].mxu0
      %v1041 = vadd.f32 0.0, %v1040
      %v1042 = vpop.f32.mrb[0].mxu0
      %v1043 = vpop.f32.mrb[0].mxu0
      %v1044 = vadd.f32 0.0, %v1043
      %v1045 = vpop.f32.mrb[0].mxu0
      %1046 = vmatprep.mubr.bf16.mxu0 0
      %1047 = vmatmul.mubr.bf16.gmra.mrb[0].mxu0 %v996
      %v1048 = vpop.f32.mrb[0].mxu0
      %v1049 = vadd.f32 0.0, %v1048
      %v1050 = vpop.f32.mrb[0].mxu0
      %v1051 = vpop.f32.mrb[0].mxu0
      %v1052 = vadd.f32 0.0, %v1051
      %v1053 = vpop.f32.mrb[0].mxu0
      %1054 = vmatprep.mubr.bf16.mxu0 0
      %1055 = vmatmul.mubr.bf16.gmra.mrb[0].mxu0 %v998
      %v1056 = vpop.f32.mrb[0].mxu0
      %v1057 = vadd.f32 0.0, %v1056
      %v1058 = vpop.f32.mrb[0].mxu0
      %v1059 = vpop.f32.mrb[0].mxu0
      %v1060 = vadd.f32 0.0, %v1059
      %v1061 = vpop.f32.mrb[0].mxu0
      %1062 = vmatprep.mubr.bf16.mxu0 0
      %1063 = vmatmul.mubr.bf16.gmra.mrb[0].mxu0 %v1000
      %v1064 = vpop.f32.mrb[0].mxu0
      %v1065 = vadd.f32 0.0, %v1064
      %v1066 = vpop.f32.mrb[0].mxu0
      %v1067 = vpop.f32.mrb[0].mxu0
      %v1068 = vadd.f32 0.0, %v1067
      %v1069 = vpop.f32.mrb[0].mxu0
      %1070 = vdwg.mxu0
      %v1071 = vsel %vm881, %v1041, 0.0
      %v1072 = vsel %vm881, %v1044, 0.0
      %v1073 = vadd.f32 %v1071, %v1072
      %v1074 = vsel %vm881, %v1049, 0.0
      %v1075 = vadd.f32 %v1073, %v1074
      %v1076 = vsel %vm881, %v1052, 0.0
      %v1077 = vadd.f32 %v1075, %v1076
      %v1078 = vsel %vm881, %v1057, 0.0
      %v1079 = vadd.f32 %v1077, %v1078
      %v1080 = vsel %vm881, %v1060, 0.0
      %v1081 = vadd.f32 %v1079, %v1080
      %v1082 = vsel %vm881, %v1065, 0.0
      %v1083 = vadd.f32 %v1081, %v1082
      %v1084 = vsel %vm881, %v1068, 0.0
      %v1085 = vadd.f32 %v1083, %v1084
      %v1086 = vrot.slane %v1085, 4
      %v1087 = vadd.f32 %v1085, %v1086
      %v1088 = vrot.slane %v1087, 2
      %v1089 = vadd.f32 %v1087, %v1088
      %v1090 = vrot.slane %v1089, 1
      %v1091 = vadd.f32 %v1089, %v1090
      %v1092 = vmul.f32 %v1041, %v1041
      %v1093 = vmul.f32 %v1044, %v1044
      %v1094 = vmul.f32 %v1049, %v1049
      %v1095 = vmul.f32 %v1052, %v1052
      %v1096 = vmul.f32 %v1057, %v1057
      %v1097 = vmul.f32 %v1060, %v1060
      %v1098 = vmul.f32 %v1065, %v1065
      %v1099 = vmul.f32 %v1068, %v1068
      %v1100 = vsel %vm881, %v1092, 0.0
      %v1101 = vsel %vm881, %v1093, 0.0
      %v1102 = vadd.f32 %v1100, %v1101
      %v1103 = vsel %vm881, %v1094, 0.0
      %v1104 = vadd.f32 %v1102, %v1103
      %v1105 = vsel %vm881, %v1095, 0.0
      %v1106 = vadd.f32 %v1104, %v1105
      %v1107 = vsel %vm881, %v1096, 0.0
      %v1108 = vadd.f32 %v1106, %v1107
      %v1109 = vsel %vm881, %v1097, 0.0
      %v1110 = vadd.f32 %v1108, %v1109
      %v1111 = vsel %vm881, %v1098, 0.0
      %v1112 = vadd.f32 %v1110, %v1111
      %v1113 = vsel %vm881, %v1099, 0.0
      %v1114 = vadd.f32 %v1112, %v1113
      %v1115 = vrot.slane %v1114, 4
      %v1116 = vadd.f32 %v1114, %v1115
      %v1117 = vrot.slane %v1116, 2
      %v1118 = vadd.f32 %v1116, %v1117
      %v1119 = vrot.slane %v1118, 1
      %v1120 = vadd.f32 %v1118, %v1119
      %vm1121 = vcmask 1040384
      %v1122 = vsel %vm1121, %v1091, %v1120
      %vm1123 = vcmask 58368
      %1124 = vst.msk [vmem:[%s235] sm:$0x3] %vm1123, %v1122
      %v1125 = vpack.c.bf16 %v1044, %v1041
      %v1126 = vpack.c.bf16 %v1052, %v1049
      %v1127 = vpack.c.bf16 %v1060, %v1057
      %v1128 = vpack.c.bf16 %v1068, %v1065
      %v1133 = vunpack.c.l.b16 %v1125
      %v1134 = vunpack.c.h.b16 %v1125
      %v1135 = vunpack.c.l.b16 %v1126
      %v1136 = vunpack.c.h.b16 %v1126
      %v1137 = vunpack.c.l.b16 %v1127
      %v1138 = vunpack.c.h.b16 %v1127
      %v1139 = vunpack.c.l.b16 %v1128
      %v1140 = vunpack.c.h.b16 %v1128
      %v1141 = vpack.c.b16 %v1133, %v1133
      %v1142 = vpack.c.b16 %v1134, %v1134
      %v1143 = vpack.c.b16 %v1135, %v1135
      %v1144 = vpack.c.b16 %v1136, %v1136
      %v1145 = vpack.c.b16 %v1137, %v1137
      %v1146 = vpack.c.b16 %v1138, %v1138
      %v1147 = vpack.c.b16 %v1139, %v1139
      %v1148 = vpack.c.b16 %v1140, %v1140
      %1157 = vst.msk [vmem:[%s231] sm:$0xf] %vm291, %v1141
      %1158 = vst.msk [vmem:[%s231 + $0x4] sm:$0xf] %vm291, %v1142
      %1159 = vst.msk [vmem:[%s231 + $0x8] sm:$0xf] %vm291, %v1143
      %1160 = vst.msk [vmem:[%s231 + $0xc] sm:$0xf] %vm291, %v1144
      %1161 = vst.msk [vmem:[%s231 + $0x10] sm:$0xf] %vm291, %v1145
      %1162 = vst.msk [vmem:[%s231 + $0x14] sm:$0xf] %vm291, %v1146
      %1163 = vst.msk [vmem:[%s231 + $0x18] sm:$0xf] %vm291, %v1147
      %1164 = vst.msk [vmem:[%s231 + $0x1c] sm:$0xf] %vm291, %v1148
      %p1165 = scmp.lt.s32.totalorder %s17, 1
      %s1166 = scalar_select %p1165, %s17, 1
      %s1167 = smul.addr %s1166, 8
      %s1168 = smul.addr %s1167, 4
      %s1169 = scalar_lea.vmem %s4, %s1168
      %p1170 = scmp.lt.s32.totalorder %s17, 1
      %s1171 = scalar_select %p1170, %s17, 1
      %s1172 = smul.addr %s1171, 2
      %s1173 = scalar_lea.vmem %s5, %s1172
      // Predicated region
      $region37: #{down_forward.3} parent=35 // pred_check
        %p1174 = pneg %p124
      $region38: #{down_forward.3} parent=35 // pred_check_branch
        %1176 = sbr.rel (%p1174) target = $region40
      $region39: #{down_forward.3} parent=35 // pred_region
        _
      $region40: #{down_forward.3} parent=35 // pred_fallthru
        _
      // Predicated region
      $region41: #{down_forward.3} parent=35 // pred_check
        %p1177 = pneg %p150
      $region42: #{down_forward.3} parent=35 // pred_check_branch
        %1179 = sbr.rel (%p1177) target = $region44
      $region43: #{down_forward.3} parent=35 // pred_region
        _
      $region44: #{down_forward.3} parent=35 // pred_fallthru
        _
    $region36: #{down_forward.3} parent=5 // pred_fallthru
      _
    %p1180 = scmp.le.s32.totalorder 2, %s12
    // Predicated region
    $region45: #{down_forward.3} parent=5 // pred_check
      %p1181 = pneg %p1180
    $region46: #{down_forward.3} parent=5 // pred_check_branch
      %1183 = sbr.rel (%p1181) target = $region48
    $region47: #{down_forward.3} parent=5 // pred_region
      %s1184 = ssub.s32 %s12, 2
      // Predicated region
      $region49: #{down_forward.3} parent=47 // pred_check
        %p1185 = pneg %p130
      $region50: #{down_forward.3} parent=47 // pred_check_branch
        %1187 = sbr.rel (%p1185) target = $region52
      $region51: #{down_forward.3} parent=47 // pred_region
        %p1188 = scmp.lt.s32.totalorder %s18, 1
        %s1189 = scalar_select %p1188, %s18, 1
        %s1190 = smul.addr %s1189, 8
        %s1191 = smul.addr %s1190, 4
        %s1192 = scalar_lea.vmem %s4, %s1191
      $region52: #{down_forward.3} parent=47 // pred_fallthru
        _
      // Predicated region
      $region53: #{down_forward.3} parent=47 // pred_check
        %p1193 = pneg %p156
      $region54: #{down_forward.3} parent=47 // pred_check_branch
        %1195 = sbr.rel (%p1193) target = $region56
      $region55: #{down_forward.3} parent=47 // pred_region
        %p1196 = scmp.lt.s32.totalorder %s18, 1
        %s1197 = scalar_select %p1196, %s18, 1
        %s1198 = smul.addr %s1197, 2
        %s1199 = scalar_lea.vmem %s5, %s1198
      $region56: #{down_forward.3} parent=47 // pred_fallthru
        _
    $region48: #{down_forward.3} parent=5 // pred_fallthru
      _
  $region6: #{down_forward.3} parent=0 // loop_footer
    %s16 = sadd.s32 1, %s12
  $region7: #{down_forward.3} parent=0 // loop_footer_branch
    %11 = sbr.rel target = $region3
  $region8: #{down_forward.3} parent=0 // loop_exit
    _

// kernel: down_forward.2
$region0: #{down_forward.2}
  #allocation0 [shape = 'u32[]', space=smem, size = 0x4, offset = 0x4, fixed_abs, tag = 'smem constant byte address 0x4 - core index']
  #allocation1 [shape = 'u32[144,128]{1,0:T(1,128)}', space=vmem, size = 0x12000, scoped, tag = 'internal scratch']
  #allocation2 [shape = 'bf16[10,10,4]{2,1,0:T(8,128)(2,1)}', space=vmem, size = 0xa000, scoped, tag = 'scratch operand']
  %s0 = inlined_call_operand.vmem [shape: bf16[2,8,8,4], index: 0, kind: input, shape index: {}]
  %s1 = inlined_call_operand.vmem [shape: bf16[36,8], index: 1, kind: input, shape index: {}]
  %s2 = inlined_call_operand.vmem [shape: bf16[2,64,8], index: 2, kind: output, shape index: {0}]
  %s3 = inlined_call_operand.vmem [shape: f32[2,2,8], index: 3, kind: output, shape index: {1}]
  %4 = xla_tuple %s2, %s3
  %s5 = sld [smem:[#allocation0]]
  $region49: #{down_forward.2} parent=0
    _
  %s7 = ssub.s32 1, %s5
  %s8 = scalar_select 0, %s7, %s5
  loop: start=0, step=1, limit=4
  $region2: #{down_forward.2} parent=0 // loop_pre_header
    _
  $region3: #{down_forward.2} parent=0 // loop_header
    %s10 = sphi 0, %s14
    %p11 = scmp.ge.s32.totalorder %s10, 4
    %s20 = sphi 0, %s22
    %s23 = sphi 0, %s20
    %s24 = sphi 0, %s23
    %s40 = sphi 0, %s24
    %s44 = sphi 0, %s44
    %s46 = sphi 0, %s44
    %s47 = sphi 0, %s46
    %s61 = sphi 0, %s47
    %s67 = sphi 0, %s69
    %s70 = sphi 0, %s67
    %s71 = sphi 0, %s70
    %s87 = sphi 0, %s71
    %s93 = sphi 0, %s95
    %s96 = sphi 0, %s93
    %s97 = sphi 0, %s96
    %s113 = sphi 0, %s97
  $region4: #{down_forward.2} parent=0 // loop_header_branch
    %13 = sbr.rel (%p11) target = $region8
  $region5: #{down_forward.2} parent=0 // loop_body
    %s15 = ssub.s32 %s10, 1
    %s16 = ssub.s32 %s10, 2
    %s17 = sadd.s32 %s10, 1
    %s18 = ssub.s32 %s10, %s17
    %p19 = scmp.eq.s32.totalorder %s18, 0
    %s21 = sadd.s32 %s20, 1
    %s22 = scalar_select %p19, %s20, %s21
    %p25 = pneg %p19
    %p26 = scmp.eq.s32.totalorder %s10, 1
    %p27 = por %p25, %p26
    %p28 = scmp.ne.s32.totalorder %s20, %s23
    %p29 = scmp.eq.s32.totalorder %s10, 0
    %p30 = por %p28, %p29
    %p31 = scmp.ne.s32.totalorder %s20, %s23
    %p32 = scmp.eq.s32.totalorder %s15, 1
    %p33 = por %p31, %p32
    %p34 = scmp.ne.s32.totalorder %s23, %s24
    %p35 = scmp.eq.s32.totalorder %s15, 0
    %p36 = por %p34, %p35
    %p37 = scmp.ne.s32.totalorder %s23, %s24
    %p38 = scmp.eq.s32.totalorder %s16, 1
    %p39 = por %p37, %p38
    %p41 = scmp.ne.s32.totalorder %s24, %s40
    %p42 = scmp.eq.s32.totalorder %s16, 0
    %p43 = por %p41, %p42
    %s45 = sadd.s32 %s44, 1
    %p48 = scmp.eq.s32.totalorder %s10, 1
    %p49 = scmp.ne.s32.totalorder %s44, %s46
    %p50 = scmp.eq.s32.totalorder %s10, 0
    %p51 = por %p49, %p50
    %p52 = scmp.ne.s32.totalorder %s44, %s46
    %p53 = scmp.eq.s32.totalorder %s15, 1
    %p54 = por %p52, %p53
    %p55 = scmp.ne.s32.totalorder %s46, %s47
    %p56 = scmp.eq.s32.totalorder %s15, 0
    %p57 = por %p55, %p56
    %p58 = scmp.ne.s32.totalorder %s46, %s47
    %p59 = scmp.eq.s32.totalorder %s16, 1
    %p60 = por %p58, %p59
    %p62 = scmp.ne.s32.totalorder %s47, %s61
    %p63 = scmp.eq.s32.totalorder %s16, 0
    %p64 = por %p62, %p63
    %s65 = ssub.s32 %s10, %s17
    %p66 = scmp.eq.s32.totalorder %s65, 0
    %s68 = sadd.s32 %s67, 1
    %s69 = scalar_select %p66, %s67, %s68
    %p72 = pneg %p66
    %p73 = scmp.eq.s32.totalorder %s10, 1
    %p74 = por %p72, %p73
    %p75 = scmp.ne.s32.totalorder %s67, %s70
    %p76 = scmp.eq.s32.totalorder %s10, 0
    %p77 = por %p75, %p76
    %p78 = scmp.ne.s32.totalorder %s67, %s70
    %p79 = scmp.eq.s32.totalorder %s15, 1
    %p80 = por %p78, %p79
    %p81 = scmp.ne.s32.totalorder %s70, %s71
    %p82 = scmp.eq.s32.totalorder %s15, 0
    %p83 = por %p81, %p82
    %p84 = scmp.ne.s32.totalorder %s70, %s71
    %p85 = scmp.eq.s32.totalorder %s16, 1
    %p86 = por %p84, %p85
    %p88 = scmp.ne.s32.totalorder %s71, %s87
    %p89 = scmp.eq.s32.totalorder %s16, 0
    %p90 = por %p88, %p89
    %s91 = ssub.s32 %s10, %s17
    %p92 = scmp.eq.s32.totalorder %s91, 0
    %s94 = sadd.s32 %s93, 1
    %s95 = scalar_select %p92, %s93, %s94
    %p98 = pneg %p92
    %p99 = scmp.eq.s32.totalorder %s10, 1
    %p100 = por %p98, %p99
    %p101 = scmp.ne.s32.totalorder %s93, %s96
    %p102 = scmp.eq.s32.totalorder %s10, 0
    %p103 = por %p101, %p102
    %p104 = scmp.ne.s32.totalorder %s93, %s96
    %p105 = scmp.eq.s32.totalorder %s15, 1
    %p106 = por %p104, %p105
    %p107 = scmp.ne.s32.totalorder %s96, %s97
    %p108 = scmp.eq.s32.totalorder %s15, 0
    %p109 = por %p107, %p108
    %p110 = scmp.ne.s32.totalorder %s96, %s97
    %p111 = scmp.eq.s32.totalorder %s16, 1
    %p112 = por %p110, %p111
    %p114 = scmp.ne.s32.totalorder %s97, %s113
    %p115 = scmp.eq.s32.totalorder %s16, 0
    %p116 = por %p114, %p115
    %p117 = scmp.le.s32.totalorder 1, %s10
    %p118 = scmp.lt.s32.totalorder %s10, 3
    %p119 = pnand %p117, %p118
    %p120 = pneg %p119
    // Predicated region
    $region9: #{down_forward.2} parent=5 // pred_check
      _
    $region10: #{down_forward.2} parent=5 // pred_check_branch
      %122 = sbr.rel (%p119) target = $region12
    $region11: #{down_forward.2} parent=5 // pred_region
      %s123 = ssub.s32 %s10, 1
      // Predicated region
      $region13: #{down_forward.2} parent=11 // pred_check
        %p124 = pneg %p57
      $region14: #{down_forward.2} parent=11 // pred_check_branch
        %126 = sbr.rel (%p124) target = $region16
      $region15: #{down_forward.2} parent=11 // pred_region
        _
      $region16: #{down_forward.2} parent=11 // pred_fallthru
        _
    $region12: #{down_forward.2} parent=5 // pred_fallthru
      _
    %p127 = scmp.lt.s32.totalorder %s10, 2
    // Predicated region
    $region17: #{down_forward.2} parent=5 // pred_check
      %p128 = pneg %p127
    $region18: #{down_forward.2} parent=5 // pred_check_branch
      %130 = sbr.rel (%p128) target = $region20
    $region19: #{down_forward.2} parent=5 // pred_region
      // Predicated region
      $region21: #{down_forward.2} parent=19 // pred_check
        %p131 = pneg %p30
      $region22: #{down_forward.2} parent=19 // pred_check_branch
        %133 = sbr.rel (%p131) target = $region24
      $region23: #{down_forward.2} parent=19 // pred_region
        %p134 = scmp.lt.s32.totalorder %s10, 1
        %s135 = scalar_select %p134, %s10, 1
        %s136 = smul.addr %s135, 8
        %s137 = smul.addr %s136, 4
        %s138 = scalar_lea.vmem %s0, %s137
      $region24: #{down_forward.2} parent=19 // pred_fallthru
        _
    $region20: #{down_forward.2} parent=5 // pred_fallthru
      _
    %p139 = scmp.le.s32.totalorder 1, %s10
    %p140 = scmp.lt.s32.totalorder %s10, 3
    %p141 = pnand %p139, %p140
    %p142 = pneg %p141
    // Predicated region
    $region25: #{down_forward.2} parent=5 // pred_check
      _
    $region26: #{down_forward.2} parent=5 // pred_check_branch
      %144 = sbr.rel (%p141) target = $region28
    $region27: #{down_forward.2} parent=5 // pred_region
      %s145 = ssub.s32 %s10, 1
      %p146 = scmp.lt.s32.totalorder %s15, 1
      %s147 = scalar_select %p146, %s15, 1
      %s148 = smul.addr %s147, 8
      %s149 = smul.addr %s148, 4
      %s150 = scalar_lea.vmem %s0, %s149
      %p151 = pneg %p36
      %p152 = pneg %p33
      %p153 = pneg %p57
      %p154 = pneg %p54
      %p155 = pneg %p83
      %p156 = pneg %p80
      %p157 = scmp.lt.s32.totalorder %s15, 1
      %s158 = scalar_select %p157, %s15, 1
      %s159 = smul.addr %s158, 8
      %s160 = smul.addr %s159, 4
      %s161 = scalar_lea.vmem %s2, %s160
      %p162 = pneg %p109
      %p163 = pneg %p106
      %p164 = scmp.lt.s32.totalorder %s15, 1
      %s165 = scalar_select %p164, %s15, 1
      %s166 = smul.addr %s165, 2
      %s167 = scalar_lea.vmem %s3, %s166
      %p168 = scmp.lt.s32.totalorder %s15, 1
      %s169 = scalar_select %p168, %s15, 1
      %s170 = smul.addr %s169, 8
      %s171 = smul.addr %s170, 4
      %s172 = scalar_lea.vmem %s0, %s171
      %p173 = scmp.lt.s32.totalorder %s15, 1
      %s174 = scalar_select %p173, %s15, 1
      %s175 = smul.addr %s174, 8
      %s176 = smul.addr %s175, 4
      %s177 = scalar_lea.vmem %s2, %s176
      %p178 = scmp.lt.s32.totalorder %s15, 1
      %s179 = scalar_select %p178, %s15, 1
      %s180 = smul.addr %s179, 2
      %s181 = scalar_lea.vmem %s3, %s180
      %v183 = vld [vmem:[%s172] sm:$0xf]
      %v184 = vld [vmem:[%s172 + $0x4] sm:$0xf]
      %v185 = vld [vmem:[%s172 + $0x8] sm:$0xf]
      %v186 = vld [vmem:[%s172 + $0xc] sm:$0xf]
      %v187 = vld [vmem:[%s172 + $0x10] sm:$0xf]
      %v188 = vld [vmem:[%s172 + $0x14] sm:$0xf]
      %v189 = vld [vmem:[%s172 + $0x18] sm:$0xf]
      %v190 = vld [vmem:[%s172 + $0x1c] sm:$0xf]
      %vm191 = vcmask 27648
      %192 = vst.msk [vmem:[#allocation2] sm:$0xf] %vm191, 0
      %vm193 = vcmask 24576
      %194 = vst.msk [vmem:[#allocation2 + $0x4] sm:$0x1] %vm193, 0
      %s195 = scalar_lea.vmem [#allocation2], 72
      %196 = vst.msk [vmem:[%s195] sm:$0xf] %vm191, 0
      %197 = vst.msk [vmem:[%s195 + $0x4] sm:$0x1] %vm193, 0
      %s198 = scalar_lea.vmem [#allocation2], 8
      %vm199 = vcmask 24576
      %vm200 = vsmask.f32 256
      %vm201 = vmand %vm199, %vm200
      %v202 = vld [vmem:[%s198] sm:$0x1]
      %v203 = vsel %vm201, 0, %v202
      %204 = vst [vmem:[%s198] sm:$0x1] %v203
      %v205 = vld [vmem:[%s198 + $0x8] sm:$0x1]
      %v206 = vsel %vm201, 0, %v205
      %207 = vst [vmem:[%s198 + $0x8] sm:$0x1] %v206
      %v208 = vld [vmem:[%s198 + $0x10] sm:$0x1]
      %v209 = vsel %vm201, 0, %v208
      %210 = vst [vmem:[%s198 + $0x10] sm:$0x1] %v209
      %v211 = vld [vmem:[%s198 + $0x18] sm:$0x1]
      %v212 = vsel %vm201, 0, %v211
      %213 = vst [vmem:[%s198 + $0x18] sm:$0x1] %v212
      %v214 = vld [vmem:[%s198 + $0x20] sm:$0x1]
      %v215 = vsel %vm201, 0, %v214
      %216 = vst [vmem:[%s198 + $0x20] sm:$0x1] %v215
      %v217 = vld [vmem:[%s198 + $0x28] sm:$0x1]
      %v218 = vsel %vm201, 0, %v217
      %219 = vst [vmem:[%s198 + $0x28] sm:$0x1] %v218
      %v220 = vld [vmem:[%s198 + $0x30] sm:$0x1]
      %v221 = vsel %vm201, 0, %v220
      %222 = vst [vmem:[%s198 + $0x30] sm:$0x1] %v221
      %v223 = vld [vmem:[%s198 + $0x38] sm:$0x1]
      %v224 = vsel %vm201, 0, %v223
      %225 = vst [vmem:[%s198 + $0x38] sm:$0x1] %v224
      %vm226 = vsmask.f32 7938
      %vm227 = vmand %vm199, %vm226
      %v228 = vld [vmem:[%s198 + $0x4] sm:$0x1]
      %v229 = vsel %vm227, 0, %v228
      %230 = vst [vmem:[%s198 + $0x4] sm:$0x1] %v229
      %v231 = vld [vmem:[%s198 + $0xc] sm:$0x1]
      %v232 = vsel %vm227, 0, %v231
      %233 = vst [vmem:[%s198 + $0xc] sm:$0x1] %v232
      %v234 = vld [vmem:[%s198 + $0x14] sm:$0x1]
      %v235 = vsel %vm227, 0, %v234
      %236 = vst [vmem:[%s198 + $0x14] sm:$0x1] %v235
      %v237 = vld [vmem:[%s198 + $0x1c] sm:$0x1]
      %v238 = vsel %vm227, 0, %v237
      %239 = vst [vmem:[%s198 + $0x1c] sm:$0x1] %v238
      %v240 = vld [vmem:[%s198 + $0x24] sm:$0x1]
      %v241 = vsel %vm227, 0, %v240
      %242 = vst [vmem:[%s198 + $0x24] sm:$0x1] %v241
      %v243 = vld [vmem:[%s198 + $0x2c] sm:$0x1]
      %v244 = vsel %vm227, 0, %v243
      %245 = vst [vmem:[%s198 + $0x2c] sm:$0x1] %v244
      %v246 = vld [vmem:[%s198 + $0x34] sm:$0x1]
      %v247 = vsel %vm227, 0, %v246
      %248 = vst [vmem:[%s198 + $0x34] sm:$0x1] %v247
      %v249 = vld [vmem:[%s198 + $0x3c] sm:$0x1]
      %v250 = vsel %vm227, 0, %v249
      %251 = vst [vmem:[%s198 + $0x3c] sm:$0x1] %v250
      %v253 = vshrl.u32 %v183, 16
      %v255 = vrot.slane %v253, 7
      %v256 = vshll.u32 %v183, 16
      %v258 = vor.u32 %v255, %v256
      %v259 = vrot.slane %v255, 4
      %v261 = vshrl.u32 %v184, 16
      %v263 = vrot.slane %v261, 7
      %v264 = vshll.u32 %v184, 16
      %v266 = vor.u32 %v263, %v264
      %v267 = vrot.slane %v263, 4
      %v269 = vshrl.u32 %v185, 16
      %v271 = vrot.slane %v269, 7
      %v272 = vshll.u32 %v185, 16
      %v274 = vor.u32 %v271, %v272
      %v275 = vrot.slane %v271, 4
      %v277 = vshrl.u32 %v186, 16
      %v279 = vrot.slane %v277, 7
      %v280 = vshll.u32 %v186, 16
      %v282 = vor.u32 %v279, %v280
      %v283 = vrot.slane %v279, 4
      %v285 = vshrl.u32 %v187, 16
      %v287 = vrot.slane %v285, 7
      %v288 = vshll.u32 %v187, 16
      %v290 = vor.u32 %v287, %v288
      %v291 = vrot.slane %v287, 4
      %v293 = vshrl.u32 %v188, 16
      %v295 = vrot.slane %v293, 7
      %v296 = vshll.u32 %v188, 16
      %v298 = vor.u32 %v295, %v296
      %v299 = vrot.slane %v295, 4
      %v301 = vshrl.u32 %v189, 16
      %v303 = vrot.slane %v301, 7
      %v304 = vshll.u32 %v189, 16
      %v306 = vor.u32 %v303, %v304
      %v307 = vrot.slane %v303, 4
      %v309 = vshrl.u32 %v190, 16
      %v311 = vrot.slane %v309, 7
      %v312 = vshll.u32 %v190, 16
      %v314 = vor.u32 %v311, %v312
      %v315 = vrot.slane %v311, 4
      %vm332 = vcmask 27648
      %vm333 = vmand %vm332, %vm226
      %v334 = vld [vmem:[%s198] sm:$0xf]
      %v335 = vsel %vm333, %v258, %v334
      %336 = vst [vmem:[%s198] sm:$0xf] %v335
      %v337 = vld [vmem:[%s198 + $0x4] sm:$0x1]
      %v338 = vsel %vm201, %v259, %v337
      %339 = vst [vmem:[%s198 + $0x4] sm:$0x1] %v338
      %v340 = vld [vmem:[%s198 + $0x8] sm:$0xf]
      %v341 = vsel %vm333, %v266, %v340
      %342 = vst [vmem:[%s198 + $0x8] sm:$0xf] %v341
      %v343 = vld [vmem:[%s198 + $0xc] sm:$0x1]
      %v344 = vsel %vm201, %v267, %v343
      %345 = vst [vmem:[%s198 + $0xc] sm:$0x1] %v344
      %v346 = vld [vmem:[%s198 + $0x10] sm:$0xf]
      %v347 = vsel %vm333, %v274, %v346
      %348 = vst [vmem:[%s198 + $0x10] sm:$0xf] %v347
      %v349 = vld [vmem:[%s198 + $0x14] sm:$0x1]
      %v350 = vsel %vm201, %v275, %v349
      %351 = vst [vmem:[%s198 + $0x14] sm:$0x1] %v350
      %v352 = vld [vmem:[%s198 + $0x18] sm:$0xf]
      %v353 = vsel %vm333, %v282, %v352
      %354 = vst [vmem:[%s198 + $0x18] sm:$0xf] %v353
      %v355 = vld [vmem:[%s198 + $0x1c] sm:$0x1]
      %v356 = vsel %vm201, %v283, %v355
      %357 = vst [vmem:[%s198 + $0x1c] sm:$0x1] %v356
      %v358 = vld [vmem:[%s198 + $0x20] sm:$0xf]
      %v359 = vsel %vm333, %v290, %v358
      %360 = vst [vmem:[%s198 + $0x20] sm:$0xf] %v359
      %v361 = vld [vmem:[%s198 + $0x24] sm:$0x1]
      %v362 = vsel %vm201, %v291, %v361
      %363 = vst [vmem:[%s198 + $0x24] sm:$0x1] %v362
      %v364 = vld [vmem:[%s198 + $0x28] sm:$0xf]
      %v365 = vsel %vm333, %v298, %v364
      %366 = vst [vmem:[%s198 + $0x28] sm:$0xf] %v365
      %v367 = vld [vmem:[%s198 + $0x2c] sm:$0x1]
      %v368 = vsel %vm201, %v299, %v367
      %369 = vst [vmem:[%s198 + $0x2c] sm:$0x1] %v368
      %v370 = vld [vmem:[%s198 + $0x30] sm:$0xf]
      %v371 = vsel %vm333, %v306, %v370
      %372 = vst [vmem:[%s198 + $0x30] sm:$0xf] %v371
      %v373 = vld [vmem:[%s198 + $0x34] sm:$0x1]
      %v374 = vsel %vm201, %v307, %v373
      %375 = vst [vmem:[%s198 + $0x34] sm:$0x1] %v374
      %v376 = vld [vmem:[%s198 + $0x38] sm:$0xf]
      %v377 = vsel %vm333, %v314, %v376
      %378 = vst [vmem:[%s198 + $0x38] sm:$0xf] %v377
      %v379 = vld [vmem:[%s198 + $0x3c] sm:$0x1]
      %v380 = vsel %vm201, %v315, %v379
      %381 = vst [vmem:[%s198 + $0x3c] sm:$0x1] %v380
      %v382 = vld [vmem:[#allocation2] sm:$0xf]
      %v383 = vld [vmem:[#allocation2 + $0x8] sm:$0xf]
      %v384 = vld [vmem:[#allocation2 + $0x10] sm:$0xf]
      %v385 = vld [vmem:[#allocation2 + $0x18] sm:$0xf]
      %v386 = vld [vmem:[#allocation2 + $0x20] sm:$0xf]
      %v387 = vld [vmem:[#allocation2 + $0x28] sm:$0xf]
      %v388 = vld [vmem:[#allocation2 + $0x30] sm:$0xf]
      %v389 = vld [vmem:[#allocation2 + $0x38] sm:$0xf]
      %v390 = vld [vmem:[#allocation2 + $0x40] sm:$0xf]
      %v391 = vld [vmem:[#allocation2 + $0x48] sm:$0xf]
      %v392 = vld [vmem:[#allocation2 + $0x4] sm:$0x1]
      %v393 = vld [vmem:[#allocation2 + $0xc] sm:$0x1]
      %v394 = vld [vmem:[#allocation2 + $0x14] sm:$0x1]
      %v395 = vld [vmem:[#allocation2 + $0x1c] sm:$0x1]
      %v396 = vld [vmem:[#allocation2 + $0x24] sm:$0x1]
      %v397 = vld [vmem:[#allocation2 + $0x2c] sm:$0x1]
      %v398 = vld [vmem:[#allocation2 + $0x34] sm:$0x1]
      %v399 = vld [vmem:[#allocation2 + $0x3c] sm:$0x1]
      %v400 = vld [vmem:[#allocation2 + $0x44] sm:$0x1]
      %v401 = vld [vmem:[#allocation2 + $0x4c] sm:$0x1]
      %v402 = vld [vmem:[#allocation2] sm:$0xe]
      %v403 = vld [vmem:[#allocation2 + $0x8] sm:$0xe]
      %v404 = vld [vmem:[#allocation2 + $0x10] sm:$0xe]
      %v405 = vld [vmem:[#allocation2 + $0x18] sm:$0xe]
      %v406 = vld [vmem:[#allocation2 + $0x20] sm:$0xe]
      %v407 = vld [vmem:[#allocation2 + $0x28] sm:$0xe]
      %v408 = vld [vmem:[#allocation2 + $0x30] sm:$0xe]
      %v409 = vld [vmem:[#allocation2 + $0x38] sm:$0xe]
      %v410 = vld [vmem:[#allocation2 + $0x40] sm:$0xe]
      %v411 = vld [vmem:[#allocation2 + $0x48] sm:$0xe]
      %vm412 = vsmask.f32 3328
      %vm413 = vsmask.f32 7440
      %vm414 = vmor %vm412, %vm413
      %v416 = vshrl.u32 %v382, 16
      %v418 = vrot.slane %v416, 4
      %v419 = vshll.u32 %v382, 16
      %v421 = vrot.slane %v419, 5
      %v422 = vor.u32 %v418, %v421
      %v423 = vrot.slane %v422, 4
      %v425 = vshll.u32 %v392, 16
      %v427 = vrot.slane %v425, 5
      %v428 = vsel %vm414, %v423, %v427
      %v430 = vshrl.u32 %v383, 16
      %v432 = vrot.slane %v430, 4
      %v433 = vshll.u32 %v383, 16
      %v435 = vrot.slane %v433, 5
      %v436 = vor.u32 %v432, %v435
      %v437 = vrot.slane %v436, 4
      %v439 = vshll.u32 %v393, 16
      %v441 = vrot.slane %v439, 5
      %v442 = vsel %vm414, %v437, %v441
      %v444 = vshrl.u32 %v384, 16
      %v446 = vrot.slane %v444, 4
      %v447 = vshll.u32 %v384, 16
      %v449 = vrot.slane %v447, 5
      %v450 = vor.u32 %v446, %v449
      %v451 = vrot.slane %v450, 4
      %v453 = vshll.u32 %v394, 16
      %v455 = vrot.slane %v453, 5
      %v456 = vsel %vm414, %v451, %v455
      %v458 = vshrl.u32 %v385, 16
      %v460 = vrot.slane %v458, 4
      %v461 = vshll.u32 %v385, 16
      %v463 = vrot.slane %v461, 5
      %v464 = vor.u32 %v460, %v463
      %v465 = vrot.slane %v464, 4
      %v467 = vshll.u32 %v395, 16
      %v469 = vrot.slane %v467, 5
      %v470 = vsel %vm414, %v465, %v469
      %v472 = vshrl.u32 %v386, 16
      %v474 = vrot.slane %v472, 4
      %v475 = vshll.u32 %v386, 16
      %v477 = vrot.slane %v475, 5
      %v478 = vor.u32 %v474, %v477
      %v479 = vrot.slane %v478, 4
      %v481 = vshll.u32 %v396, 16
      %v483 = vrot.slane %v481, 5
      %v484 = vsel %vm414, %v479, %v483
      %v486 = vshrl.u32 %v387, 16
      %v488 = vrot.slane %v486, 4
      %v489 = vshll.u32 %v387, 16
      %v491 = vrot.slane %v489, 5
      %v492 = vor.u32 %v488, %v491
      %v493 = vrot.slane %v492, 4
      %v495 = vshll.u32 %v397, 16
      %v497 = vrot.slane %v495, 5
      %v498 = vsel %vm414, %v493, %v497
      %v500 = vshrl.u32 %v388, 16
      %v502 = vrot.slane %v500, 4
      %v503 = vshll.u32 %v388, 16
      %v505 = vrot.slane %v503, 5
      %v506 = vor.u32 %v502, %v505
      %v507 = vrot.slane %v506, 4
      %v509 = vshll.u32 %v398, 16
      %v511 = vrot.slane %v509, 5
      %v512 = vsel %vm414, %v507, %v511
      %v514 = vshrl.u32 %v389, 16
      %v516 = vrot.slane %v514, 4
      %v517 = vshll.u32 %v389, 16
      %v519 = vrot.slane %v517, 5
      %v520 = vor.u32 %v516, %v519
      %v521 = vrot.slane %v520, 4
      %v523 = vshll.u32 %v399, 16
      %v525 = vrot.slane %v523, 5
      %v526 = vsel %vm414, %v521, %v525
      %vm543 = vcmask 1042432
      %vm544 = vcmask 1046532
      %vm545 = vmor %vm543, %vm544
      %v546 = vrot.slane %v402, 5
      %v547 = vrot.slane %v546, 4
      %v548 = vrot.slane %v392, 5
      %v549 = vsel %vm545, %v547, %v548
      %v550 = vrot.slane %v403, 5
      %v551 = vrot.slane %v550, 4
      %v552 = vrot.slane %v393, 5
      %v553 = vsel %vm545, %v551, %v552
      %v554 = vrot.slane %v404, 5
      %v555 = vrot.slane %v554, 4
      %v556 = vrot.slane %v394, 5
      %v557 = vsel %vm545, %v555, %v556
      %v558 = vrot.slane %v405, 5
      %v559 = vrot.slane %v558, 4
      %v560 = vrot.slane %v395, 5
      %v561 = vsel %vm545, %v559, %v560
      %v562 = vrot.slane %v406, 5
      %v563 = vrot.slane %v562, 4
      %v564 = vrot.slane %v396, 5
      %v565 = vsel %vm545, %v563, %v564
      %v566 = vrot.slane %v407, 5
      %v567 = vrot.slane %v566, 4
      %v568 = vrot.slane %v397, 5
      %v569 = vsel %vm545, %v567, %v568
      %v570 = vrot.slane %v408, 5
      %v571 = vrot.slane %v570, 4
      %v572 = vrot.slane %v398, 5
      %v573 = vsel %vm545, %v571, %v572
      %v574 = vrot.slane %v409, 5
      %v575 = vrot.slane %v574, 4
      %v576 = vrot.slane %v399, 5
      %v577 = vsel %vm545, %v575, %v576
      %v579 = vshrl.u32 %v390, 16
      %v581 = vrot.slane %v579, 4
      %v582 = vshll.u32 %v390, 16
      %v584 = vrot.slane %v582, 5
      %v585 = vor.u32 %v581, %v584
      %v586 = vrot.slane %v585, 4
      %v588 = vshll.u32 %v400, 16
      %v590 = vrot.slane %v588, 5
      %v591 = vsel %vm414, %v586, %v590
      %v594 = vrot.slane %v410, 5
      %v595 = vrot.slane %v594, 4
      %v596 = vrot.slane %v400, 5
      %v597 = vsel %vm545, %v595, %v596
      %v599 = vshrl.u32 %v391, 16
      %v601 = vrot.slane %v599, 4
      %v602 = vshll.u32 %v391, 16
      %v604 = vrot.slane %v602, 5
      %v605 = vor.u32 %v601, %v604
      %v606 = vrot.slane %v605, 4
      %v608 = vshll.u32 %v401, 16
      %v610 = vrot.slane %v608, 5
      %v611 = vsel %vm414, %v606, %v610
      %v614 = vrot.slane %v411, 5
      %v615 = vrot.slane %v614, 4
      %v616 = vrot.slane %v401, 5
      %v617 = vsel %vm545, %v615, %v616
      %v626 = vunpack.c.l.b16 %v382
      %v627 = vunpack.c.l.b16 %v383
      %v628 = vunpack.c.l.b16 %v384
      %v629 = vunpack.c.l.b16 %v385
      %v630 = vunpack.c.l.b16 %v386
      %v631 = vunpack.c.l.b16 %v387
      %v632 = vunpack.c.l.b16 %v388
      %v633 = vunpack.c.l.b16 %v389
      %v634 = vpack.c.b16 %v627, %v626
      %v635 = vpack.c.b16 %v629, %v628
      %v636 = vpack.c.b16 %v631, %v630
      %v637 = vpack.c.b16 %v633, %v632
      %v638 = vunpack.c.l.b16 %v428
      %v639 = vunpack.c.l.b16 %v442
      %v640 = vunpack.c.l.b16 %v456
      %v641 = vunpack.c.l.b16 %v470
      %v642 = vunpack.c.l.b16 %v484
      %v643 = vunpack.c.l.b16 %v498
      %v644 = vunpack.c.l.b16 %v512
      %v645 = vunpack.c.l.b16 %v526
      %v646 = vpack.c.b16 %v639, %v638
      %v647 = vpack.c.b16 %v641, %v640
      %v648 = vpack.c.b16 %v643, %v642
      %v649 = vpack.c.b16 %v645, %v644
      %650 = vrot.lane.b32.xlu0 %v646, 4
      %v651 = vpop.permute.xlu0 %650
      %652 = vrot.lane.b32.xlu0 %v647, 4
      %v653 = vpop.permute.xlu0 %652
      %654 = vrot.lane.b32.xlu0 %v648, 4
      %v655 = vpop.permute.xlu0 %654
      %656 = vrot.lane.b32.xlu0 %v649, 4
      %v657 = vpop.permute.xlu0 %656
      %v658 = vunpack.c.l.b16 %v549
      %v659 = vunpack.c.l.b16 %v553
      %v660 = vunpack.c.l.b16 %v557
      %v661 = vunpack.c.l.b16 %v561
      %v662 = vunpack.c.l.b16 %v565
      %v663 = vunpack.c.l.b16 %v569
      %v664 = vunpack.c.l.b16 %v573
      %v665 = vunpack.c.l.b16 %v577
      %v666 = vpack.c.b16 %v659, %v658
      %v667 = vpack.c.b16 %v661, %v660
      %v668 = vpack.c.b16 %v663, %v662
      %v669 = vpack.c.b16 %v665, %v664
      %670 = vrot.lane.b32.xlu0 %v666, 8
      %v671 = vpop.permute.xlu0 %670
      %672 = vrot.lane.b32.xlu0 %v667, 8
      %v673 = vpop.permute.xlu0 %672
      %674 = vrot.lane.b32.xlu0 %v668, 8
      %v675 = vpop.permute.xlu0 %674
      %676 = vrot.lane.b32.xlu0 %v669, 8
      %v677 = vpop.permute.xlu0 %676
      %v679 = vunpack.c.l.b16 %v390
      %v680 = vpack.c.b16 %v628, %v627
      %v681 = vpack.c.b16 %v630, %v629
      %v682 = vpack.c.b16 %v632, %v631
      %v683 = vpack.c.b16 %v679, %v633
      %684 = vrot.lane.b32.xlu0 %v680, 12
      %v685 = vpop.permute.xlu0 %684
      %686 = vrot.lane.b32.xlu0 %v681, 12
      %v687 = vpop.permute.xlu0 %686
      %688 = vrot.lane.b32.xlu0 %v682, 12
      %v689 = vpop.permute.xlu0 %688
      %690 = vrot.lane.b32.xlu0 %v683, 12
      %v691 = vpop.permute.xlu0 %690
      %v692 = vunpack.c.l.b16 %v591
      %v693 = vpack.c.b16 %v640, %v639
      %v694 = vpack.c.b16 %v642, %v641
      %v695 = vpack.c.b16 %v644, %v643
      %v696 = vpack.c.b16 %v692, %v645
      %697 = vrot.lane.b32.xlu0 %v693, 16
      %v698 = vpop.permute.xlu0 %697
      %699 = vrot.lane.b32.xlu0 %v694, 16
      %v700 = vpop.permute.xlu0 %699
      %701 = vrot.lane.b32.xlu0 %v695, 16
      %v702 = vpop.permute.xlu0 %701
      %703 = vrot.lane.b32.xlu0 %v696, 16
      %v704 = vpop.permute.xlu0 %703
      %v705 = vunpack.c.l.b16 %v597
      %v706 = vpack.c.b16 %v660, %v659
      %v707 = vpack.c.b16 %v662, %v661
      %v708 = vpack.c.b16 %v664, %v663
      %v709 = vpack.c.b16 %v705, %v665
      %710 = vrot.lane.b32.xlu0 %v706, 20
      %v711 = vpop.permute.xlu0 %710
      %712 = vrot.lane.b32.xlu0 %v707, 20
      %v713 = vpop.permute.xlu0 %712
      %714 = vrot.lane.b32.xlu0 %v708, 20
      %v715 = vpop.permute.xlu0 %714
      %716 = vrot.lane.b32.xlu0 %v709, 20
      %v717 = vpop.permute.xlu0 %716
      %v719 = vunpack.c.l.b16 %v391
      %v720 = vpack.c.b16 %v719, %v679
      %721 = vrot.lane.b32.xlu0 %v635, 24
      %v722 = vpop.permute.xlu0 %721
      %723 = vrot.lane.b32.xlu0 %v636, 24
      %v724 = vpop.permute.xlu0 %723
      %725 = vrot.lane.b32.xlu0 %v637, 24
      %v726 = vpop.permute.xlu0 %725
      %727 = vrot.lane.b32.xlu0 %v720, 24
      %v728 = vpop.permute.xlu0 %727
      %v729 = vunpack.c.l.b16 %v611
      %v730 = vpack.c.b16 %v729, %v692
      %731 = vrot.lane.b32.xlu0 %v647, 28
      %v732 = vpop.permute.xlu0 %731
      %733 = vrot.lane.b32.xlu0 %v648, 28
      %v734 = vpop.permute.xlu0 %733
      %735 = vrot.lane.b32.xlu0 %v649, 28
      %v736 = vpop.permute.xlu0 %735
      %737 = vrot.lane.b32.xlu0 %v730, 28
      %v738 = vpop.permute.xlu0 %737
      %v739 = vunpack.c.l.b16 %v617
      %v740 = vpack.c.b16 %v739, %v705
      %741 = vrot.lane.b32.xlu0 %v667, 32
      %v742 = vpop.permute.xlu0 %741
      %743 = vrot.lane.b32.xlu0 %v668, 32
      %v744 = vpop.permute.xlu0 %743
      %745 = vrot.lane.b32.xlu0 %v669, 32
      %v746 = vpop.permute.xlu0 %745
      %747 = vrot.lane.b32.xlu0 %v740, 32
      %v748 = vpop.permute.xlu0 %747
      %vm749 = vcmask 31744
      %v752 = vsel %vm749, %v634, %v651
      %v755 = vsel %vm749, %v635, %v653
      %v758 = vsel %vm749, %v636, %v655
      %v761 = vsel %vm749, %v637, %v657
      %vm762 = vcmask 64512
      %v764 = vsel %vm762, %v752, %v671
      %v766 = vsel %vm762, %v755, %v673
      %v768 = vsel %vm762, %v758, %v675
      %v770 = vsel %vm762, %v761, %v677
      %vm771 = vcmask 97280
      %v773 = vsel %vm771, %v764, %v685
      %v775 = vsel %vm771, %v766, %v687
      %v777 = vsel %vm771, %v768, %v689
      %v779 = vsel %vm771, %v770, %v691
      %vm780 = vcmask 130048
      %v782 = vsel %vm780, %v773, %v698
      %v784 = vsel %vm780, %v775, %v700
      %v786 = vsel %vm780, %v777, %v702
      %v788 = vsel %vm780, %v779, %v704
      %vm789 = vcmask 162816
      %v791 = vsel %vm789, %v782, %v711
      %v793 = vsel %vm789, %v784, %v713
      %v795 = vsel %vm789, %v786, %v715
      %v797 = vsel %vm789, %v788, %v717
      %vm798 = vcmask 195584
      %v800 = vsel %vm798, %v791, %v722
      %v802 = vsel %vm798, %v793, %v724
      %v804 = vsel %vm798, %v795, %v726
      %v806 = vsel %vm798, %v797, %v728
      %vm807 = vcmask 228352
      %v809 = vsel %vm807, %v800, %v732
      %v811 = vsel %vm807, %v802, %v734
      %v813 = vsel %vm807, %v804, %v736
      %v815 = vsel %vm807, %v806, %v738
      %vm816 = vcmask 261120
      %v818 = vsel %vm816, %v809, %v742
      %v820 = vsel %vm816, %v811, %v744
      %v822 = vsel %vm816, %v813, %v746
      %v824 = vsel %vm816, %v815, %v748
      %v825 = vld [vmem:[%s1] sm:$0xf]
      %v826 = vld [vmem:[%s1 + $0x4] sm:$0xf]
      %v827 = vld [vmem:[%s1 + $0x8] sm:$0xf]
      %v828 = vld [vmem:[%s1 + $0xc] sm:$0xf]
      %v829 = vld [vmem:[%s1 + $0x10] sm:$0x3]
      %v835 = vunpack.c.l.b16 %v825
      %v836 = vunpack.c.l.b16 %v826
      %v837 = vunpack.c.l.b16 %v827
      %v838 = vunpack.c.l.b16 %v828
      %v839 = vunpack.c.l.b16 %v829
      %v840 = vpack.c.b16 %v836, %v835
      %v841 = vpack.c.b16 %v838, %v837
      %v842 = vpack.c.b16 %v839, %v839
      %vm845 = vcmask 293888
      %v846 = vsel %vm845, %v818, 0
      %v848 = vsel %vm845, %v820, 0
      %v850 = vsel %vm845, %v822, 0
      %v852 = vsel %vm845, %v824, 0
      %vm854 = vcmask 1041408
      %v856 = vsel %vm854, %v842, 0
      %858 = vmatprep.subr.bf16.mxu0 0
      %859 = vmatpush1.bf16.msra.mxu0 %v840
      %860 = vmatprep.subr.bf16.mxu0 0
      %861 = vmatpush1.bf16.msra.mxu0 %v841
      %862 = vmatprep.subr.bf16.mxu0 0
      %863 = vmatpush1.bf16.msra.mxu0 %v856
      %864 = vmatprep.subr.bf16.mxu0 0
      %865 = vmatpush1.bf16.msra.mxu0 0
      %866 = vmatprep.subr.bf16.mxu0 0
      %867 = vmatpush1.bf16.msra.mxu0 0
      %868 = vmatprep.subr.bf16.mxu0 0
      %869 = vmatpush1.bf16.msra.mxu0 0
      %870 = vmatprep.subr.bf16.mxu0 0
      %871 = vmatpush1.bf16.msra.mxu0 0
      %872 = vmatprep.subr.bf16.mxu0 0
      %873 = vmatpush1.bf16.msra.mxu0 0
      %874 = vmatprep.subr.bf16.mxu0 0
      %875 = vmatpush1.bf16.msra.mxu0 0
      %876 = vmatprep.subr.bf16.mxu0 0
      %877 = vmatpush1.bf16.msra.mxu0 0
      %878 = vmatprep.subr.bf16.mxu0 0
      %879 = vmatpush1.bf16.msra.mxu0 0
      %880 = vmatprep.subr.bf16.mxu0 0
      %881 = vmatpush1.bf16.msra.mxu0 0
      %882 = vmatprep.subr.bf16.mxu0 0
      %883 = vmatpush1.bf16.msra.mxu0 0
      %884 = vmatprep.subr.bf16.mxu0 0
      %885 = vmatpush1.bf16.msra.mxu0 0
      %886 = vmatprep.subr.bf16.mxu0 0
      %887 = vmatpush1.bf16.msra.mxu0 0
      %888 = vmatprep.subr.bf16.mxu0 0
      %889 = vmatpush1.bf16.msra.mxu0 0
      %890 = vmatprep.mubr.bf16.mxu0 0
      %891 = vmatmul.mubr.bf16.gmra.mrb[0].mxu0 %v846
      %v892 = vpop.f32.mrb[0].mxu0
      %v893 = vadd.f32 0.0, %v892
      %v894 = vpop.f32.mrb[0].mxu0
      %v895 = vpop.f32.mrb[0].mxu0
      %v896 = vadd.f32 0.0, %v895
      %v897 = vpop.f32.mrb[0].mxu0
      %898 = vmatprep.mubr.bf16.mxu0 0
      %899 = vmatmul.mubr.bf16.gmra.mrb[0].mxu0 %v848
      %v900 = vpop.f32.mrb[0].mxu0
      %v901 = vadd.f32 0.0, %v900
      %v902 = vpop.f32.mrb[0].mxu0
      %v903 = vpop.f32.mrb[0].mxu0
      %v904 = vadd.f32 0.0, %v903
      %v905 = vpop.f32.mrb[0].mxu0
      %906 = vmatprep.mubr.bf16.mxu0 0
      %907 = vmatmul.mubr.bf16.gmra.mrb[0].mxu0 %v850
      %v908 = vpop.f32.mrb[0].mxu0
      %v909 = vadd.f32 0.0, %v908
      %v910 = vpop.f32.mrb[0].mxu0
      %v911 = vpop.f32.mrb[0].mxu0
      %v912 = vadd.f32 0.0, %v911
      %v913 = vpop.f32.mrb[0].mxu0
      %914 = vmatprep.mubr.bf16.mxu0 0
      %915 = vmatmul.mubr.bf16.gmra.mrb[0].mxu0 %v852
      %v916 = vpop.f32.mrb[0].mxu0
      %v917 = vadd.f32 0.0, %v916
      %v918 = vpop.f32.mrb[0].mxu0
      %v919 = vpop.f32.mrb[0].mxu0
      %v920 = vadd.f32 0.0, %v919
      %v921 = vpop.f32.mrb[0].mxu0
      %922 = vdwg.mxu0
      %v923 = vsel %vm762, %v893, 0.0
      %v924 = vsel %vm762, %v896, 0.0
      %v925 = vadd.f32 %v923, %v924
      %v926 = vsel %vm762, %v901, 0.0
      %v927 = vadd.f32 %v925, %v926
      %v928 = vsel %vm762, %v904, 0.0
      %v929 = vadd.f32 %v927, %v928
      %v930 = vsel %vm762, %v909, 0.0
      %v931 = vadd.f32 %v929, %v930
      %v932 = vsel %vm762, %v912, 0.0
      %v933 = vadd.f32 %v931, %v932
      %v934 = vsel %vm762, %v917, 0.0
      %v935 = vadd.f32 %v933, %v934
      %v936 = vsel %vm762, %v920, 0.0
      %v937 = vadd.f32 %v935, %v936
      %v938 = vrot.slane %v937, 4
      %v939 = vadd.f32 %v937, %v938
      %v940 = vrot.slane %v939, 2
      %v941 = vadd.f32 %v939, %v940
      %v942 = vrot.slane %v941, 1
      %v943 = vadd.f32 %v941, %v942
      %v944 = vmul.f32 %v893, %v893
      %v945 = vmul.f32 %v896, %v896
      %v946 = vmul.f32 %v901, %v901
      %v947 = vmul.f32 %v904, %v904
      %v948 = vmul.f32 %v909, %v909
      %v949 = vmul.f32 %v912, %v912
      %v950 = vmul.f32 %v917, %v917
      %v951 = vmul.f32 %v920, %v920
      %v952 = vsel %vm762, %v944, 0.0
      %v953 = vsel %vm762, %v945, 0.0
      %v954 = vadd.f32 %v952, %v953
      %v955 = vsel %vm762, %v946, 0.0
      %v956 = vadd.f32 %v954, %v955
      %v957 = vsel %vm762, %v947, 0.0
      %v958 = vadd.f32 %v956, %v957
      %v959 = vsel %vm762, %v948, 0.0
      %v960 = vadd.f32 %v958, %v959
      %v961 = vsel %vm762, %v949, 0.0
      %v962 = vadd.f32 %v960, %v961
      %v963 = vsel %vm762, %v950, 0.0
      %v964 = vadd.f32 %v962, %v963
      %v965 = vsel %vm762, %v951, 0.0
      %v966 = vadd.f32 %v964, %v965
      %v967 = vrot.slane %v966, 4
      %v968 = vadd.f32 %v966, %v967
      %v969 = vrot.slane %v968, 2
      %v970 = vadd.f32 %v968, %v969
      %v971 = vrot.slane %v970, 1
      %v972 = vadd.f32 %v970, %v971
      %vm973 = vcmask 1040384
      %v974 = vsel %vm973, %v943, %v972
      %vm975 = vcmask 58368
      %976 = vst.msk [vmem:[%s181] sm:$0x3] %vm975, %v974
      %v977 = vpack.c.bf16 %v896, %v893
      %v978 = vpack.c.bf16 %v904, %v901
      %v979 = vpack.c.bf16 %v912, %v909
      %v980 = vpack.c.bf16 %v920, %v917
      %v985 = vunpack.c.l.b16 %v977
      %v986 = vunpack.c.h.b16 %v977
      %v987 = vunpack.c.l.b16 %v978
      %v988 = vunpack.c.h.b16 %v978
      %v989 = vunpack.c.l.b16 %v979
      %v990 = vunpack.c.h.b16 %v979
      %v991 = vunpack.c.l.b16 %v980
      %v992 = vunpack.c.h.b16 %v980
      %v993 = vpack.c.b16 %v985, %v985
      %v994 = vpack.c.b16 %v986, %v986
      %v995 = vpack.c.b16 %v987, %v987
      %v996 = vpack.c.b16 %v988, %v988
      %v997 = vpack.c.b16 %v989, %v989
      %v998 = vpack.c.b16 %v990, %v990
      %v999 = vpack.c.b16 %v991, %v991
      %v1000 = vpack.c.b16 %v992, %v992
      %vm1009 = vcmask 60416
      %1010 = vst.msk [vmem:[%s177] sm:$0xf] %vm1009, %v993
      %1011 = vst.msk [vmem:[%s177 + $0x4] sm:$0xf] %vm1009, %v994
      %1012 = vst.msk [vmem:[%s177 + $0x8] sm:$0xf] %vm1009, %v995
      %1013 = vst.msk [vmem:[%s177 + $0xc] sm:$0xf] %vm1009, %v996
      %1014 = vst.msk [vmem:[%s177 + $0x10] sm:$0xf] %vm1009, %v997
      %1015 = vst.msk [vmem:[%s177 + $0x14] sm:$0xf] %vm1009, %v998
      %1016 = vst.msk [vmem:[%s177 + $0x18] sm:$0xf] %vm1009, %v999
      %1017 = vst.msk [vmem:[%s177 + $0x1c] sm:$0xf] %vm1009, %v1000
      %p1018 = scmp.lt.s32.totalorder %s15, 1
      %s1019 = scalar_select %p1018, %s15, 1
      %s1020 = smul.addr %s1019, 8
      %s1021 = smul.addr %s1020, 4
      %s1022 = scalar_lea.vmem %s2, %s1021
      %p1023 = scmp.lt.s32.totalorder %s15, 1
      %s1024 = scalar_select %p1023, %s15, 1
      %s1025 = smul.addr %s1024, 2
      %s1026 = scalar_lea.vmem %s3, %s1025
      // Predicated region
      $region29: #{down_forward.2} parent=27 // pred_check
        %p1027 = pneg %p80
      $region30: #{down_forward.2} parent=27 // pred_check_branch
        %1029 = sbr.rel (%p1027) target = $region32
      $region31: #{down_forward.2} parent=27 // pred_region
        _
      $region32: #{down_forward.2} parent=27 // pred_fallthru
        _
      // Predicated region
      $region33: #{down_forward.2} parent=27 // pred_check
        %p1030 = pneg %p106
      $region34: #{down_forward.2} parent=27 // pred_check_branch
        %1032 = sbr.rel (%p1030) target = $region36
      $region35: #{down_forward.2} parent=27 // pred_region
        _
      $region36: #{down_forward.2} parent=27 // pred_fallthru
        _
    $region28: #{down_forward.2} parent=5 // pred_fallthru
      _
    %p1033 = scmp.le.s32.totalorder 2, %s10
    // Predicated region
    $region37: #{down_forward.2} parent=5 // pred_check
      %p1034 = pneg %p1033
    $region38: #{down_forward.2} parent=5 // pred_check_branch
      %1036 = sbr.rel (%p1034) target = $region40
    $region39: #{down_forward.2} parent=5 // pred_region
      %s1037 = ssub.s32 %s10, 2
      // Predicated region
      $region41: #{down_forward.2} parent=39 // pred_check
        %p1038 = pneg %p86
      $region42: #{down_forward.2} parent=39 // pred_check_branch
        %1040 = sbr.rel (%p1038) target = $region44
      $region43: #{down_forward.2} parent=39 // pred_region
        %p1041 = scmp.lt.s32.totalorder %s16, 1
        %s1042 = scalar_select %p1041, %s16, 1
        %s1043 = smul.addr %s1042, 8
        %s1044 = smul.addr %s1043, 4
        %s1045 = scalar_lea.vmem %s2, %s1044
      $region44: #{down_forward.2} parent=39 // pred_fallthru
        _
      // Predicated region
      $region45: #{down_forward.2} parent=39 // pred_check
        %p1046 = pneg %p112
      $region46: #{down_forward.2} parent=39 // pred_check_branch
        %1048 = sbr.rel (%p1046) target = $region48
      $region47: #{down_forward.2} parent=39 // pred_region
        %p1049 = scmp.lt.s32.totalorder %s16, 1
        %s1050 = scalar_select %p1049, %s16, 1
        %s1051 = smul.addr %s1050, 2
        %s1052 = scalar_lea.vmem %s3, %s1051
      $region48: #{down_forward.2} parent=39 // pred_fallthru
        _
    $region40: #{down_forward.2} parent=5 // pred_fallthru
      _
  $region6: #{down_forward.2} parent=0 // loop_footer
    %s14 = sadd.s32 1, %s10
  $region7: #{down_forward.2} parent=0 // loop_footer_branch
    %9 = sbr.rel target = $region3
  $region8: #{down_forward.2} parent=0 // loop_exit
    _

</llo_original>
